<compile_context>
chip_gen: v5e
topology: v5e:2x2
jax: 0.10.0
libtpu: 0.0.40
codegen_flags: <defaults>
</compile_context>

<pallas_src>
import math
from functools import partial

import jax
import jax.numpy as jnp
from jax.experimental import pallas as pl
from jax.experimental.pallas import tpu as pltpu

INPUT_DIM = 2
HIDDEN_DIM = 16
BATCH = 2
SEQ = 8


def _gate_update(gates, c, H):
    """PyTorch LSTM gate math on a (B, 4H) gate tile (i, f, g, o order).

    The g-gate columns of the weights/bias were pre-scaled by 2 on the host,
    so a single full-tile sigmoid covers all four gates:
        tanh(z) = 2*sigmoid(2z) - 1.
    """
    act = jax.nn.sigmoid(gates)          # one EUP pass over the whole tile
    i = act[:, 0 * H:1 * H]
    f = act[:, 1 * H:2 * H]
    g = 2.0 * act[:, 2 * H:3 * H] - 1.0  # two VPU ops
    o = act[:, 3 * H:4 * H]
    c_new = f * c + i * g
    h_new = o * jnp.tanh(c_new)
    return h_new, c_new


def lstm_autoencoder_kernel(x_ref,
                            enc_wih_ref, enc_whh_ref, enc_b_ref,
                            dec_wih_ref, dec_whh_ref, dec_b_ref,
                            out_ref, *, B, T):
    # x_ref: (T*B, D) time-major flattened input (wrapper did the reshape).
    # out_ref: (T, B, D) time-major output (wrapper transposes back).
    D = x_ref.shape[1]
    H = enc_whh_ref.shape[0]

    enc_whh = enc_whh_ref[...]                                   # (H, 4H)

    # ---- all encoder input projections in one GEMM, bias folded in ----
    xw = (jnp.dot(x_ref[...], enc_wih_ref[...],
                  preferred_element_type=jnp.float32)
          + enc_b_ref[...])                                      # (T*B, 4H)

    # ---- encoder recurrence: one MXU matmul per step on the critical chain.
    #      (TODO(synk): profile VPU broadcast-FMA ladder vs MXU per generation)
    h = jnp.zeros((B, H), jnp.float32)
    c = jnp.zeros((B, H), jnp.float32)
    for t in range(T):                      # T static -> unrolled
        gates = xw[t * B:(t + 1) * B, :] + jnp.dot(
            h, enc_whh, preferred_element_type=jnp.float32)
        h, c = _gate_update(gates, c, H)

    # ---- decoder: input is the repeated final encoder hidden, so its input
    #      projection (+bias) is loop-invariant -> hoisted out of the loop ----
    dec_xproj = (jnp.dot(h, dec_wih_ref[...],
                         preferred_element_type=jnp.float32)
                 + dec_b_ref[...])                               # (B, 4D)

    # decoder hidden dim D is tiny (=input_dim): keep the recurrent projection
    # off the MXU as a VPU broadcast-multiply ladder (rows hoisted once).
    dec_whh = dec_whh_ref[...]                                   # (D, 4D)
    dec_rows = [dec_whh[d:d + 1, :] for d in range(D)]           # each (1, 4D)

    hd = jnp.zeros((B, D), jnp.float32)
    cd = jnp.zeros((B, D), jnp.float32)
    for t in range(T):
        gates = dec_xproj
        for d in range(D):
            gates = gates + hd[:, d:d + 1] * dec_rows[d]
        hd, cd = _gate_update(gates, cd, D)
        out_ref[t] = hd                      # per-step store, time-major


def lstm_autoencoder_forward(x, params):
    """x: (B, T, D_in) float32, PyTorch batch_first convention."""
    B, T, D = x.shape
    # Tiny wrapper-side transpose/reshape (128 bytes) beats per-step in-kernel
    # relayouts on the serial chain.
    x_tm = jnp.transpose(x, (1, 0, 2)).reshape(T * B, D)
    vmem = pl.BlockSpec(memory_space=pltpu.MemorySpace.VMEM)
    out_tm = pl.pallas_call(
        partial(lstm_autoencoder_kernel, B=B, T=T),
        out_shape=jax.ShapeDtypeStruct((T, B, D), jnp.float32),
        in_specs=[vmem] * 7,
        out_specs=vmem,
    )(x_tm, *params)
    return jnp.transpose(out_tm, (1, 0, 2))   # back to (B, T, D)


# ---------------- deterministic parameter init (PyTorch nn.LSTM style) ----------------
def _fold_for_kernel(w_ih, w_hh, b_ih, b_hh, H):
    """Transpose, fold biases, and pre-scale the g-gate (cols 2H:3H of the 4H
    axis) by 2 so the kernel can use tanh(z) = 2*sigmoid(2z) - 1."""
    scale = jnp.ones((4 * H,), jnp.float32).at[2 * H:3 * H].set(2.0)
    wih_t = w_ih.T * scale[None, :]          # (in_dim, 4H)
    whh_t = w_hh.T * scale[None, :]          # (H, 4H)
    b = ((b_ih + b_hh) * scale)[None, :]     # (1, 4H)
    return wih_t, whh_t, b


def init_params(key, input_dim=INPUT_DIM, hidden_dim=HIDDEN_DIM):
    def u(k, shape, bound):
        return jax.random.uniform(k, shape, jnp.float32, -bound, bound)

    ks = jax.random.split(key, 8)
    k_enc = 1.0 / math.sqrt(hidden_dim)
    k_dec = 1.0 / math.sqrt(input_dim)

    # encoder: LSTM(input_dim -> hidden_dim)
    enc_w_ih = u(ks[0], (4 * hidden_dim, input_dim), k_enc)
    enc_w_hh = u(ks[1], (4 * hidden_dim, hidden_dim), k_enc)
    enc_b_ih = u(ks[2], (4 * hidden_dim,), k_enc)
    enc_b_hh = u(ks[3], (4 * hidden_dim,), k_enc)
    # decoder: LSTM(hidden_dim -> input_dim)
    dec_w_ih = u(ks[4], (4 * input_dim, hidden_dim), k_dec)
    dec_w_hh = u(ks[5], (4 * input_dim, input_dim), k_dec)
    dec_b_ih = u(ks[6], (4 * input_dim,), k_dec)
    dec_b_hh = u(ks[7], (4 * input_dim,), k_dec)

    raw = (enc_w_ih, enc_w_hh, enc_b_ih, enc_b_hh,
           dec_w_ih, dec_w_hh, dec_b_ih, dec_b_hh)

    enc_wih_t, enc_whh_t, enc_b = _fold_for_kernel(
        enc_w_ih, enc_w_hh, enc_b_ih, enc_b_hh, hidden_dim)
    dec_wih_t, dec_whh_t, dec_b = _fold_for_kernel(
        dec_w_ih, dec_w_hh, dec_b_ih, dec_b_hh, input_dim)

    kernel_params = (enc_wih_t, enc_whh_t, enc_b,
                     dec_wih_t, dec_whh_t, dec_b)
    return raw, kernel_params


# ---------------- pure-JAX reference (mirrors PyTorch LSTM semantics) ----------------
def _lstm_ref(x, w_ih, w_hh, b_ih, b_hh):
    B, T, _ = x.shape
    H = w_hh.shape[1]
    h = jnp.zeros((B, H), jnp.float32)
    c = jnp.zeros((B, H), jnp.float32)
    outs = []
    for t in range(T):
        g = x[:, t] @ w_ih.T + b_ih + h @ w_hh.T + b_hh
        i = jax.nn.sigmoid(g[:, :H])
        f = jax.nn.sigmoid(g[:, H:2 * H])
        gg = jnp.tanh(g[:, 2 * H:3 * H])
        o = jax.nn.sigmoid(g[:, 3 * H:])
        c = f * c + i * gg
        h = o * jnp.tanh(c)
        outs.append(h)
    return jnp.stack(outs, axis=1), h


def reference_forward(x, raw_params):
    (enc_w_ih, enc_w_hh, enc_b_ih, enc_b_hh,
     dec_w_ih, dec_w_hh, dec_b_ih, dec_b_hh) = raw_params
    _, h = _lstm_ref(x, enc_w_ih, enc_w_hh, enc_b_ih, enc_b_hh)
    T = x.shape[1]
    repeated = jnp.broadcast_to(h[:, None, :], (x.shape[0], T, h.shape[-1]))
    out, _ = _lstm_ref(repeated, dec_w_ih, dec_w_hh, dec_b_ih, dec_b_hh)
    return out


if __name__ == "__main__":
    key = jax.random.PRNGKey(0)
    k_x, k_p = jax.random.split(key)
    x = jax.random.normal(k_x, (BATCH, SEQ, INPUT_DIM), jnp.float32)

    raw_params, kernel_params = init_params(k_p)

    out = lstm_autoencoder_forward(x, kernel_params)
    out = jax.block_until_ready(out)

    ref = jax.block_until_ready(reference_forward(x, raw_params))
    assert out.shape == (BATCH, SEQ, INPUT_DIM)
    assert jnp.allclose(out, ref, atol=1e-4, rtol=1e-4), (
        f"max err {jnp.max(jnp.abs(out - ref))}")

    print("KERNEL_OK")
</pallas_src>

<mosaic_0001>
module attributes {stable_mosaic.version = 11 : i64} {
  func.func @lstm_autoencoder_kernel(%arg0: memref<16x2xf32, #tpu.memory_space<vmem>>, %arg1: memref<2x64xf32, #tpu.memory_space<vmem>>, %arg2: memref<16x64xf32, #tpu.memory_space<vmem>>, %arg3: memref<1x64xf32, #tpu.memory_space<vmem>>, %arg4: memref<16x8xf32, #tpu.memory_space<vmem>>, %arg5: memref<2x8xf32, #tpu.memory_space<vmem>>, %arg6: memref<1x8xf32, #tpu.memory_space<vmem>>, %arg7: memref<8x2x2xf32, #tpu.memory_space<vmem>>) attributes {dimension_semantics = [], scalar_prefetch = 0 : i64, scratch_operands = 0 : i64, tpu.core_type = #tpu.core_type<tc>} {
    %c0 = arith.constant 0 : index
    %c0_0 = arith.constant 0 : index
    %0 = vector.load %arg2[%c0, %c0_0] : memref<16x64xf32, #tpu.memory_space<vmem>>, vector<16x64xf32>
    %c0_1 = arith.constant 0 : index
    %c0_2 = arith.constant 0 : index
    %1 = vector.load %arg0[%c0_1, %c0_2] : memref<16x2xf32, #tpu.memory_space<vmem>>, vector<16x2xf32>
    %c0_3 = arith.constant 0 : index
    %c0_4 = arith.constant 0 : index
    %2 = vector.load %arg1[%c0_3, %c0_4] : memref<2x64xf32, #tpu.memory_space<vmem>>, vector<2x64xf32>
    %cst = arith.constant dense<0.000000e+00> : vector<16x64xf32>
    %3 = tpu.matmul %1, %2, %cst {dimension_numbers = #tpu.dot_dimension_numbers<[1], [0], [0], [1], [0, 0, 1, 1], [], []>} : vector<16x2xf32>, vector<2x64xf32>, vector<16x64xf32> -> vector<16x64xf32>
    %c0_5 = arith.constant 0 : index
    %c0_6 = arith.constant 0 : index
    %4 = vector.load %arg3[%c0_5, %c0_6] : memref<1x64xf32, #tpu.memory_space<vmem>>, vector<1x64xf32>
    %5 = vector.broadcast %4 : vector<1x64xf32> to vector<16x64xf32>
    %6 = arith.addf %3, %5 : vector<16x64xf32>
    %cst_7 = arith.constant 0.000000e+00 : f32
    %7 = vector.broadcast %cst_7 : f32 to vector<2x16xf32>
    %cst_8 = arith.constant 0.000000e+00 : f32
    %8 = vector.broadcast %cst_8 : f32 to vector<2x16xf32>
    %9 = vector.extract_strided_slice %6 {offsets = [0, 0], sizes = [2, 64], strides = [1, 1]} : vector<16x64xf32> to vector<2x64xf32>
    %cst_9 = arith.constant dense<0.000000e+00> : vector<2x64xf32>
    %10 = tpu.matmul %7, %0, %cst_9 {dimension_numbers = #tpu.dot_dimension_numbers<[1], [0], [0], [1], [0, 0, 1, 1], [], []>} : vector<2x16xf32>, vector<16x64xf32>, vector<2x64xf32> -> vector<2x64xf32>
    %11 = arith.addf %9, %10 : vector<2x64xf32>
    %12 = arith.negf %11 : vector<2x64xf32>
    %13 = math.exp %12 : vector<2x64xf32>
    %cst_10 = arith.constant 1.000000e+00 : f32
    %14 = vector.broadcast %cst_10 : f32 to vector<2x64xf32>
    %15 = arith.addf %14, %13 : vector<2x64xf32>
    %16 = arith.divf %14, %15 : vector<2x64xf32>
    %17 = vector.extract_strided_slice %16 {offsets = [0, 0], sizes = [2, 16], strides = [1, 1]} : vector<2x64xf32> to vector<2x16xf32>
    %18 = vector.extract_strided_slice %16 {offsets = [0, 16], sizes = [2, 16], strides = [1, 1]} : vector<2x64xf32> to vector<2x16xf32>
    %19 = vector.extract_strided_slice %16 {offsets = [0, 32], sizes = [2, 16], strides = [1, 1]} : vector<2x64xf32> to vector<2x16xf32>
    %cst_11 = arith.constant 2.000000e+00 : f32
    %20 = vector.broadcast %cst_11 : f32 to vector<2x16xf32>
    %21 = arith.mulf %20, %19 : vector<2x16xf32>
    %cst_12 = arith.constant 1.000000e+00 : f32
    %22 = vector.broadcast %cst_12 : f32 to vector<2x16xf32>
    %23 = arith.subf %21, %22 : vector<2x16xf32>
    %24 = vector.extract_strided_slice %16 {offsets = [0, 48], sizes = [2, 16], strides = [1, 1]} : vector<2x64xf32> to vector<2x16xf32>
    %25 = arith.mulf %18, %8 : vector<2x16xf32>
    %26 = arith.mulf %17, %23 : vector<2x16xf32>
    %27 = arith.addf %25, %26 : vector<2x16xf32>
    %28 = math.tanh %27 : vector<2x16xf32>
    %29 = arith.mulf %24, %28 : vector<2x16xf32>
    %30 = vector.extract_strided_slice %6 {offsets = [2, 0], sizes = [2, 64], strides = [1, 1]} : vector<16x64xf32> to vector<2x64xf32>
    %cst_13 = arith.constant dense<0.000000e+00> : vector<2x64xf32>
    %31 = tpu.matmul %29, %0, %cst_13 {dimension_numbers = #tpu.dot_dimension_numbers<[1], [0], [0], [1], [0, 0, 1, 1], [], []>} : vector<2x16xf32>, vector<16x64xf32>, vector<2x64xf32> -> vector<2x64xf32>
    %32 = arith.addf %30, %31 : vector<2x64xf32>
    %33 = arith.negf %32 : vector<2x64xf32>
    %34 = math.exp %33 : vector<2x64xf32>
    %cst_14 = arith.constant 1.000000e+00 : f32
    %35 = vector.broadcast %cst_14 : f32 to vector<2x64xf32>
    %36 = arith.addf %35, %34 : vector<2x64xf32>
    %37 = arith.divf %35, %36 : vector<2x64xf32>
    %38 = vector.extract_strided_slice %37 {offsets = [0, 0], sizes = [2, 16], strides = [1, 1]} : vector<2x64xf32> to vector<2x16xf32>
    %39 = vector.extract_strided_slice %37 {offsets = [0, 16], sizes = [2, 16], strides = [1, 1]} : vector<2x64xf32> to vector<2x16xf32>
    %40 = vector.extract_strided_slice %37 {offsets = [0, 32], sizes = [2, 16], strides = [1, 1]} : vector<2x64xf32> to vector<2x16xf32>
    %cst_15 = arith.constant 2.000000e+00 : f32
    %41 = vector.broadcast %cst_15 : f32 to vector<2x16xf32>
    %42 = arith.mulf %41, %40 : vector<2x16xf32>
    %cst_16 = arith.constant 1.000000e+00 : f32
    %43 = vector.broadcast %cst_16 : f32 to vector<2x16xf32>
    %44 = arith.subf %42, %43 : vector<2x16xf32>
    %45 = vector.extract_strided_slice %37 {offsets = [0, 48], sizes = [2, 16], strides = [1, 1]} : vector<2x64xf32> to vector<2x16xf32>
    %46 = arith.mulf %39, %27 : vector<2x16xf32>
    %47 = arith.mulf %38, %44 : vector<2x16xf32>
    %48 = arith.addf %46, %47 : vector<2x16xf32>
    %49 = math.tanh %48 : vector<2x16xf32>
    %50 = arith.mulf %45, %49 : vector<2x16xf32>
    %51 = vector.extract_strided_slice %6 {offsets = [4, 0], sizes = [2, 64], strides = [1, 1]} : vector<16x64xf32> to vector<2x64xf32>
    %cst_17 = arith.constant dense<0.000000e+00> : vector<2x64xf32>
    %52 = tpu.matmul %50, %0, %cst_17 {dimension_numbers = #tpu.dot_dimension_numbers<[1], [0], [0], [1], [0, 0, 1, 1], [], []>} : vector<2x16xf32>, vector<16x64xf32>, vector<2x64xf32> -> vector<2x64xf32>
    %53 = arith.addf %51, %52 : vector<2x64xf32>
    %54 = arith.negf %53 : vector<2x64xf32>
    %55 = math.exp %54 : vector<2x64xf32>
    %cst_18 = arith.constant 1.000000e+00 : f32
    %56 = vector.broadcast %cst_18 : f32 to vector<2x64xf32>
    %57 = arith.addf %56, %55 : vector<2x64xf32>
    %58 = arith.divf %56, %57 : vector<2x64xf32>
    %59 = vector.extract_strided_slice %58 {offsets = [0, 0], sizes = [2, 16], strides = [1, 1]} : vector<2x64xf32> to vector<2x16xf32>
    %60 = vector.extract_strided_slice %58 {offsets = [0, 16], sizes = [2, 16], strides = [1, 1]} : vector<2x64xf32> to vector<2x16xf32>
    %61 = vector.extract_strided_slice %58 {offsets = [0, 32], sizes = [2, 16], strides = [1, 1]} : vector<2x64xf32> to vector<2x16xf32>
    %cst_19 = arith.constant 2.000000e+00 : f32
    %62 = vector.broadcast %cst_19 : f32 to vector<2x16xf32>
    %63 = arith.mulf %62, %61 : vector<2x16xf32>
    %cst_20 = arith.constant 1.000000e+00 : f32
    %64 = vector.broadcast %cst_20 : f32 to vector<2x16xf32>
    %65 = arith.subf %63, %64 : vector<2x16xf32>
    %66 = vector.extract_strided_slice %58 {offsets = [0, 48], sizes = [2, 16], strides = [1, 1]} : vector<2x64xf32> to vector<2x16xf32>
    %67 = arith.mulf %60, %48 : vector<2x16xf32>
    %68 = arith.mulf %59, %65 : vector<2x16xf32>
    %69 = arith.addf %67, %68 : vector<2x16xf32>
    %70 = math.tanh %69 : vector<2x16xf32>
    %71 = arith.mulf %66, %70 : vector<2x16xf32>
    %72 = vector.extract_strided_slice %6 {offsets = [6, 0], sizes = [2, 64], strides = [1, 1]} : vector<16x64xf32> to vector<2x64xf32>
    %cst_21 = arith.constant dense<0.000000e+00> : vector<2x64xf32>
    %73 = tpu.matmul %71, %0, %cst_21 {dimension_numbers = #tpu.dot_dimension_numbers<[1], [0], [0], [1], [0, 0, 1, 1], [], []>} : vector<2x16xf32>, vector<16x64xf32>, vector<2x64xf32> -> vector<2x64xf32>
    %74 = arith.addf %72, %73 : vector<2x64xf32>
    %75 = arith.negf %74 : vector<2x64xf32>
    %76 = math.exp %75 : vector<2x64xf32>
    %cst_22 = arith.constant 1.000000e+00 : f32
    %77 = vector.broadcast %cst_22 : f32 to vector<2x64xf32>
    %78 = arith.addf %77, %76 : vector<2x64xf32>
    %79 = arith.divf %77, %78 : vector<2x64xf32>
    %80 = vector.extract_strided_slice %79 {offsets = [0, 0], sizes = [2, 16], strides = [1, 1]} : vector<2x64xf32> to vector<2x16xf32>
    %81 = vector.extract_strided_slice %79 {offsets = [0, 16], sizes = [2, 16], strides = [1, 1]} : vector<2x64xf32> to vector<2x16xf32>
    %82 = vector.extract_strided_slice %79 {offsets = [0, 32], sizes = [2, 16], strides = [1, 1]} : vector<2x64xf32> to vector<2x16xf32>
    %cst_23 = arith.constant 2.000000e+00 : f32
    %83 = vector.broadcast %cst_23 : f32 to vector<2x16xf32>
    %84 = arith.mulf %83, %82 : vector<2x16xf32>
    %cst_24 = arith.constant 1.000000e+00 : f32
    %85 = vector.broadcast %cst_24 : f32 to vector<2x16xf32>
    %86 = arith.subf %84, %85 : vector<2x16xf32>
    %87 = vector.extract_strided_slice %79 {offsets = [0, 48], sizes = [2, 16], strides = [1, 1]} : vector<2x64xf32> to vector<2x16xf32>
    %88 = arith.mulf %81, %69 : vector<2x16xf32>
    %89 = arith.mulf %80, %86 : vector<2x16xf32>
    %90 = arith.addf %88, %89 : vector<2x16xf32>
    %91 = math.tanh %90 : vector<2x16xf32>
    %92 = arith.mulf %87, %91 : vector<2x16xf32>
    %93 = vector.extract_strided_slice %6 {offsets = [8, 0], sizes = [2, 64], strides = [1, 1]} : vector<16x64xf32> to vector<2x64xf32>
    %cst_25 = arith.constant dense<0.000000e+00> : vector<2x64xf32>
    %94 = tpu.matmul %92, %0, %cst_25 {dimension_numbers = #tpu.dot_dimension_numbers<[1], [0], [0], [1], [0, 0, 1, 1], [], []>} : vector<2x16xf32>, vector<16x64xf32>, vector<2x64xf32> -> vector<2x64xf32>
    %95 = arith.addf %93, %94 : vector<2x64xf32>
    %96 = arith.negf %95 : vector<2x64xf32>
    %97 = math.exp %96 : vector<2x64xf32>
    %cst_26 = arith.constant 1.000000e+00 : f32
    %98 = vector.broadcast %cst_26 : f32 to vector<2x64xf32>
    %99 = arith.addf %98, %97 : vector<2x64xf32>
    %100 = arith.divf %98, %99 : vector<2x64xf32>
    %101 = vector.extract_strided_slice %100 {offsets = [0, 0], sizes = [2, 16], strides = [1, 1]} : vector<2x64xf32> to vector<2x16xf32>
    %102 = vector.extract_strided_slice %100 {offsets = [0, 16], sizes = [2, 16], strides = [1, 1]} : vector<2x64xf32> to vector<2x16xf32>
    %103 = vector.extract_strided_slice %100 {offsets = [0, 32], sizes = [2, 16], strides = [1, 1]} : vector<2x64xf32> to vector<2x16xf32>
    %cst_27 = arith.constant 2.000000e+00 : f32
    %104 = vector.broadcast %cst_27 : f32 to vector<2x16xf32>
    %105 = arith.mulf %104, %103 : vector<2x16xf32>
    %cst_28 = arith.constant 1.000000e+00 : f32
    %106 = vector.broadcast %cst_28 : f32 to vector<2x16xf32>
    %107 = arith.subf %105, %106 : vector<2x16xf32>
    %108 = vector.extract_strided_slice %100 {offsets = [0, 48], sizes = [2, 16], strides = [1, 1]} : vector<2x64xf32> to vector<2x16xf32>
    %109 = arith.mulf %102, %90 : vector<2x16xf32>
    %110 = arith.mulf %101, %107 : vector<2x16xf32>
    %111 = arith.addf %109, %110 : vector<2x16xf32>
    %112 = math.tanh %111 : vector<2x16xf32>
    %113 = arith.mulf %108, %112 : vector<2x16xf32>
    %114 = vector.extract_strided_slice %6 {offsets = [10, 0], sizes = [2, 64], strides = [1, 1]} : vector<16x64xf32> to vector<2x64xf32>
    %cst_29 = arith.constant dense<0.000000e+00> : vector<2x64xf32>
    %115 = tpu.matmul %113, %0, %cst_29 {dimension_numbers = #tpu.dot_dimension_numbers<[1], [0], [0], [1], [0, 0, 1, 1], [], []>} : vector<2x16xf32>, vector<16x64xf32>, vector<2x64xf32> -> vector<2x64xf32>
    %116 = arith.addf %114, %115 : vector<2x64xf32>
    %117 = arith.negf %116 : vector<2x64xf32>
    %118 = math.exp %117 : vector<2x64xf32>
    %cst_30 = arith.constant 1.000000e+00 : f32
    %119 = vector.broadcast %cst_30 : f32 to vector<2x64xf32>
    %120 = arith.addf %119, %118 : vector<2x64xf32>
    %121 = arith.divf %119, %120 : vector<2x64xf32>
    %122 = vector.extract_strided_slice %121 {offsets = [0, 0], sizes = [2, 16], strides = [1, 1]} : vector<2x64xf32> to vector<2x16xf32>
    %123 = vector.extract_strided_slice %121 {offsets = [0, 16], sizes = [2, 16], strides = [1, 1]} : vector<2x64xf32> to vector<2x16xf32>
    %124 = vector.extract_strided_slice %121 {offsets = [0, 32], sizes = [2, 16], strides = [1, 1]} : vector<2x64xf32> to vector<2x16xf32>
    %cst_31 = arith.constant 2.000000e+00 : f32
    %125 = vector.broadcast %cst_31 : f32 to vector<2x16xf32>
    %126 = arith.mulf %125, %124 : vector<2x16xf32>
    %cst_32 = arith.constant 1.000000e+00 : f32
    %127 = vector.broadcast %cst_32 : f32 to vector<2x16xf32>
    %128 = arith.subf %126, %127 : vector<2x16xf32>
    %129 = vector.extract_strided_slice %121 {offsets = [0, 48], sizes = [2, 16], strides = [1, 1]} : vector<2x64xf32> to vector<2x16xf32>
    %130 = arith.mulf %123, %111 : vector<2x16xf32>
    %131 = arith.mulf %122, %128 : vector<2x16xf32>
    %132 = arith.addf %130, %131 : vector<2x16xf32>
    %133 = math.tanh %132 : vector<2x16xf32>
    %134 = arith.mulf %129, %133 : vector<2x16xf32>
    %135 = vector.extract_strided_slice %6 {offsets = [12, 0], sizes = [2, 64], strides = [1, 1]} : vector<16x64xf32> to vector<2x64xf32>
    %cst_33 = arith.constant dense<0.000000e+00> : vector<2x64xf32>
    %136 = tpu.matmul %134, %0, %cst_33 {dimension_numbers = #tpu.dot_dimension_numbers<[1], [0], [0], [1], [0, 0, 1, 1], [], []>} : vector<2x16xf32>, vector<16x64xf32>, vector<2x64xf32> -> vector<2x64xf32>
    %137 = arith.addf %135, %136 : vector<2x64xf32>
    %138 = arith.negf %137 : vector<2x64xf32>
    %139 = math.exp %138 : vector<2x64xf32>
    %cst_34 = arith.constant 1.000000e+00 : f32
    %140 = vector.broadcast %cst_34 : f32 to vector<2x64xf32>
    %141 = arith.addf %140, %139 : vector<2x64xf32>
    %142 = arith.divf %140, %141 : vector<2x64xf32>
    %143 = vector.extract_strided_slice %142 {offsets = [0, 0], sizes = [2, 16], strides = [1, 1]} : vector<2x64xf32> to vector<2x16xf32>
    %144 = vector.extract_strided_slice %142 {offsets = [0, 16], sizes = [2, 16], strides = [1, 1]} : vector<2x64xf32> to vector<2x16xf32>
    %145 = vector.extract_strided_slice %142 {offsets = [0, 32], sizes = [2, 16], strides = [1, 1]} : vector<2x64xf32> to vector<2x16xf32>
    %cst_35 = arith.constant 2.000000e+00 : f32
    %146 = vector.broadcast %cst_35 : f32 to vector<2x16xf32>
    %147 = arith.mulf %146, %145 : vector<2x16xf32>
    %cst_36 = arith.constant 1.000000e+00 : f32
    %148 = vector.broadcast %cst_36 : f32 to vector<2x16xf32>
    %149 = arith.subf %147, %148 : vector<2x16xf32>
    %150 = vector.extract_strided_slice %142 {offsets = [0, 48], sizes = [2, 16], strides = [1, 1]} : vector<2x64xf32> to vector<2x16xf32>
    %151 = arith.mulf %144, %132 : vector<2x16xf32>
    %152 = arith.mulf %143, %149 : vector<2x16xf32>
    %153 = arith.addf %151, %152 : vector<2x16xf32>
    %154 = math.tanh %153 : vector<2x16xf32>
    %155 = arith.mulf %150, %154 : vector<2x16xf32>
    %156 = vector.extract_strided_slice %6 {offsets = [14, 0], sizes = [2, 64], strides = [1, 1]} : vector<16x64xf32> to vector<2x64xf32>
    %cst_37 = arith.constant dense<0.000000e+00> : vector<2x64xf32>
    %157 = tpu.matmul %155, %0, %cst_37 {dimension_numbers = #tpu.dot_dimension_numbers<[1], [0], [0], [1], [0, 0, 1, 1], [], []>} : vector<2x16xf32>, vector<16x64xf32>, vector<2x64xf32> -> vector<2x64xf32>
    %158 = arith.addf %156, %157 : vector<2x64xf32>
    %159 = arith.negf %158 : vector<2x64xf32>
    %160 = math.exp %159 : vector<2x64xf32>
    %cst_38 = arith.constant 1.000000e+00 : f32
    %161 = vector.broadcast %cst_38 : f32 to vector<2x64xf32>
    %162 = arith.addf %161, %160 : vector<2x64xf32>
    %163 = arith.divf %161, %162 : vector<2x64xf32>
    %164 = vector.extract_strided_slice %163 {offsets = [0, 0], sizes = [2, 16], strides = [1, 1]} : vector<2x64xf32> to vector<2x16xf32>
    %165 = vector.extract_strided_slice %163 {offsets = [0, 16], sizes = [2, 16], strides = [1, 1]} : vector<2x64xf32> to vector<2x16xf32>
    %166 = vector.extract_strided_slice %163 {offsets = [0, 32], sizes = [2, 16], strides = [1, 1]} : vector<2x64xf32> to vector<2x16xf32>
    %cst_39 = arith.constant 2.000000e+00 : f32
    %167 = vector.broadcast %cst_39 : f32 to vector<2x16xf32>
    %168 = arith.mulf %167, %166 : vector<2x16xf32>
    %cst_40 = arith.constant 1.000000e+00 : f32
    %169 = vector.broadcast %cst_40 : f32 to vector<2x16xf32>
    %170 = arith.subf %168, %169 : vector<2x16xf32>
    %171 = vector.extract_strided_slice %163 {offsets = [0, 48], sizes = [2, 16], strides = [1, 1]} : vector<2x64xf32> to vector<2x16xf32>
    %172 = arith.mulf %165, %153 : vector<2x16xf32>
    %173 = arith.mulf %164, %170 : vector<2x16xf32>
    %174 = arith.addf %172, %173 : vector<2x16xf32>
    %175 = math.tanh %174 : vector<2x16xf32>
    %176 = arith.mulf %171, %175 : vector<2x16xf32>
    %c0_41 = arith.constant 0 : index
    %c0_42 = arith.constant 0 : index
    %177 = vector.load %arg4[%c0_41, %c0_42] : memref<16x8xf32, #tpu.memory_space<vmem>>, vector<16x8xf32>
    %cst_43 = arith.constant dense<0.000000e+00> : vector<2x8xf32>
    %178 = tpu.matmul %176, %177, %cst_43 {dimension_numbers = #tpu.dot_dimension_numbers<[1], [0], [0], [1], [0, 0, 1, 1], [], []>} : vector<2x16xf32>, vector<16x8xf32>, vector<2x8xf32> -> vector<2x8xf32>
    %c0_44 = arith.constant 0 : index
    %c0_45 = arith.constant 0 : index
    %179 = vector.load %arg6[%c0_44, %c0_45] : memref<1x8xf32, #tpu.memory_space<vmem>>, vector<1x8xf32>
    %180 = vector.broadcast %179 : vector<1x8xf32> to vector<2x8xf32>
    %181 = arith.addf %178, %180 : vector<2x8xf32>
    %c0_46 = arith.constant 0 : index
    %c0_47 = arith.constant 0 : index
    %182 = vector.load %arg5[%c0_46, %c0_47] : memref<2x8xf32, #tpu.memory_space<vmem>>, vector<2x8xf32>
    %183 = vector.extract_strided_slice %182 {offsets = [0, 0], sizes = [1, 8], strides = [1, 1]} : vector<2x8xf32> to vector<1x8xf32>
    %184 = vector.extract_strided_slice %182 {offsets = [1, 0], sizes = [1, 8], strides = [1, 1]} : vector<2x8xf32> to vector<1x8xf32>
    %cst_48 = arith.constant 0.000000e+00 : f32
    %185 = vector.broadcast %cst_48 : f32 to vector<2x2xf32>
    %cst_49 = arith.constant 0.000000e+00 : f32
    %186 = vector.broadcast %cst_49 : f32 to vector<2x2xf32>
    %187 = vector.extract_strided_slice %185 {offsets = [0, 0], sizes = [2, 1], strides = [1, 1]} : vector<2x2xf32> to vector<2x1xf32>
    %188 = vector.broadcast %187 : vector<2x1xf32> to vector<2x8xf32>
    %189 = vector.broadcast %183 : vector<1x8xf32> to vector<2x8xf32>
    %190 = arith.mulf %188, %189 : vector<2x8xf32>
    %191 = arith.addf %181, %190 : vector<2x8xf32>
    %192 = vector.extract_strided_slice %185 {offsets = [0, 1], sizes = [2, 1], strides = [1, 1]} : vector<2x2xf32> to vector<2x1xf32>
    %193 = vector.broadcast %192 : vector<2x1xf32> to vector<2x8xf32>
    %194 = vector.broadcast %184 : vector<1x8xf32> to vector<2x8xf32>
    %195 = arith.mulf %193, %194 : vector<2x8xf32>
    %196 = arith.addf %191, %195 : vector<2x8xf32>
    %197 = arith.negf %196 : vector<2x8xf32>
    %198 = math.exp %197 : vector<2x8xf32>
    %cst_50 = arith.constant 1.000000e+00 : f32
    %199 = vector.broadcast %cst_50 : f32 to vector<2x8xf32>
    %200 = arith.addf %199, %198 : vector<2x8xf32>
    %201 = arith.divf %199, %200 : vector<2x8xf32>
    %202 = vector.extract_strided_slice %201 {offsets = [0, 0], sizes = [2, 2], strides = [1, 1]} : vector<2x8xf32> to vector<2x2xf32>
    %203 = vector.extract_strided_slice %201 {offsets = [0, 2], sizes = [2, 2], strides = [1, 1]} : vector<2x8xf32> to vector<2x2xf32>
    %204 = vector.extract_strided_slice %201 {offsets = [0, 4], sizes = [2, 2], strides = [1, 1]} : vector<2x8xf32> to vector<2x2xf32>
    %cst_51 = arith.constant 2.000000e+00 : f32
    %205 = vector.broadcast %cst_51 : f32 to vector<2x2xf32>
    %206 = arith.mulf %205, %204 : vector<2x2xf32>
    %cst_52 = arith.constant 1.000000e+00 : f32
    %207 = vector.broadcast %cst_52 : f32 to vector<2x2xf32>
    %208 = arith.subf %206, %207 : vector<2x2xf32>
    %209 = vector.extract_strided_slice %201 {offsets = [0, 6], sizes = [2, 2], strides = [1, 1]} : vector<2x8xf32> to vector<2x2xf32>
    %210 = arith.mulf %203, %186 : vector<2x2xf32>
    %211 = arith.mulf %202, %208 : vector<2x2xf32>
    %212 = arith.addf %210, %211 : vector<2x2xf32>
    %213 = math.tanh %212 : vector<2x2xf32>
    %214 = arith.mulf %209, %213 : vector<2x2xf32>
    %c0_53 = arith.constant 0 : index
    %c0_54 = arith.constant 0 : index
    %c0_55 = arith.constant 0 : index
    %215 = vector.load %arg7[%c0_53, %c0_54, %c0_55] : memref<8x2x2xf32, #tpu.memory_space<vmem>>, vector<1x2x2xf32>
    %216 = vector.shape_cast %215 : vector<1x2x2xf32> to vector<2x2xf32>
    %217 = vector.shape_cast %214 : vector<2x2xf32> to vector<1x2x2xf32>
    tpu.vector_store %arg7[%c0_53, %c0_54, %c0_55], %217 {strides = array<i32>} : memref<8x2x2xf32, #tpu.memory_space<vmem>>, vector<1x2x2xf32>,
    %218 = vector.extract_strided_slice %214 {offsets = [0, 0], sizes = [2, 1], strides = [1, 1]} : vector<2x2xf32> to vector<2x1xf32>
    %219 = vector.broadcast %218 : vector<2x1xf32> to vector<2x8xf32>
    %220 = vector.broadcast %183 : vector<1x8xf32> to vector<2x8xf32>
    %221 = arith.mulf %219, %220 : vector<2x8xf32>
    %222 = arith.addf %181, %221 : vector<2x8xf32>
    %223 = vector.extract_strided_slice %214 {offsets = [0, 1], sizes = [2, 1], strides = [1, 1]} : vector<2x2xf32> to vector<2x1xf32>
    %224 = vector.broadcast %223 : vector<2x1xf32> to vector<2x8xf32>
    %225 = vector.broadcast %184 : vector<1x8xf32> to vector<2x8xf32>
    %226 = arith.mulf %224, %225 : vector<2x8xf32>
    %227 = arith.addf %222, %226 : vector<2x8xf32>
    %228 = arith.negf %227 : vector<2x8xf32>
    %229 = math.exp %228 : vector<2x8xf32>
    %cst_56 = arith.constant 1.000000e+00 : f32
    %230 = vector.broadcast %cst_56 : f32 to vector<2x8xf32>
    %231 = arith.addf %230, %229 : vector<2x8xf32>
    %232 = arith.divf %230, %231 : vector<2x8xf32>
    %233 = vector.extract_strided_slice %232 {offsets = [0, 0], sizes = [2, 2], strides = [1, 1]} : vector<2x8xf32> to vector<2x2xf32>
    %234 = vector.extract_strided_slice %232 {offsets = [0, 2], sizes = [2, 2], strides = [1, 1]} : vector<2x8xf32> to vector<2x2xf32>
    %235 = vector.extract_strided_slice %232 {offsets = [0, 4], sizes = [2, 2], strides = [1, 1]} : vector<2x8xf32> to vector<2x2xf32>
    %cst_57 = arith.constant 2.000000e+00 : f32
    %236 = vector.broadcast %cst_57 : f32 to vector<2x2xf32>
    %237 = arith.mulf %236, %235 : vector<2x2xf32>
    %cst_58 = arith.constant 1.000000e+00 : f32
    %238 = vector.broadcast %cst_58 : f32 to vector<2x2xf32>
    %239 = arith.subf %237, %238 : vector<2x2xf32>
    %240 = vector.extract_strided_slice %232 {offsets = [0, 6], sizes = [2, 2], strides = [1, 1]} : vector<2x8xf32> to vector<2x2xf32>
    %241 = arith.mulf %234, %212 : vector<2x2xf32>
    %242 = arith.mulf %233, %239 : vector<2x2xf32>
    %243 = arith.addf %241, %242 : vector<2x2xf32>
    %244 = math.tanh %243 : vector<2x2xf32>
    %245 = arith.mulf %240, %244 : vector<2x2xf32>
    %c1 = arith.constant 1 : index
    %c0_59 = arith.constant 0 : index
    %c0_60 = arith.constant 0 : index
    %246 = vector.load %arg7[%c1, %c0_59, %c0_60] : memref<8x2x2xf32, #tpu.memory_space<vmem>>, vector<1x2x2xf32>
    %247 = vector.shape_cast %246 : vector<1x2x2xf32> to vector<2x2xf32>
    %248 = vector.shape_cast %245 : vector<2x2xf32> to vector<1x2x2xf32>
    tpu.vector_store %arg7[%c1, %c0_59, %c0_60], %248 {strides = array<i32>} : memref<8x2x2xf32, #tpu.memory_space<vmem>>, vector<1x2x2xf32>,
    %249 = vector.extract_strided_slice %245 {offsets = [0, 0], sizes = [2, 1], strides = [1, 1]} : vector<2x2xf32> to vector<2x1xf32>
    %250 = vector.broadcast %249 : vector<2x1xf32> to vector<2x8xf32>
    %251 = vector.broadcast %183 : vector<1x8xf32> to vector<2x8xf32>
    %252 = arith.mulf %250, %251 : vector<2x8xf32>
    %253 = arith.addf %181, %252 : vector<2x8xf32>
    %254 = vector.extract_strided_slice %245 {offsets = [0, 1], sizes = [2, 1], strides = [1, 1]} : vector<2x2xf32> to vector<2x1xf32>
    %255 = vector.broadcast %254 : vector<2x1xf32> to vector<2x8xf32>
    %256 = vector.broadcast %184 : vector<1x8xf32> to vector<2x8xf32>
    %257 = arith.mulf %255, %256 : vector<2x8xf32>
    %258 = arith.addf %253, %257 : vector<2x8xf32>
    %259 = arith.negf %258 : vector<2x8xf32>
    %260 = math.exp %259 : vector<2x8xf32>
    %cst_61 = arith.constant 1.000000e+00 : f32
    %261 = vector.broadcast %cst_61 : f32 to vector<2x8xf32>
    %262 = arith.addf %261, %260 : vector<2x8xf32>
    %263 = arith.divf %261, %262 : vector<2x8xf32>
    %264 = vector.extract_strided_slice %263 {offsets = [0, 0], sizes = [2, 2], strides = [1, 1]} : vector<2x8xf32> to vector<2x2xf32>
    %265 = vector.extract_strided_slice %263 {offsets = [0, 2], sizes = [2, 2], strides = [1, 1]} : vector<2x8xf32> to vector<2x2xf32>
    %266 = vector.extract_strided_slice %263 {offsets = [0, 4], sizes = [2, 2], strides = [1, 1]} : vector<2x8xf32> to vector<2x2xf32>
    %cst_62 = arith.constant 2.000000e+00 : f32
    %267 = vector.broadcast %cst_62 : f32 to vector<2x2xf32>
    %268 = arith.mulf %267, %266 : vector<2x2xf32>
    %cst_63 = arith.constant 1.000000e+00 : f32
    %269 = vector.broadcast %cst_63 : f32 to vector<2x2xf32>
    %270 = arith.subf %268, %269 : vector<2x2xf32>
    %271 = vector.extract_strided_slice %263 {offsets = [0, 6], sizes = [2, 2], strides = [1, 1]} : vector<2x8xf32> to vector<2x2xf32>
    %272 = arith.mulf %265, %243 : vector<2x2xf32>
    %273 = arith.mulf %264, %270 : vector<2x2xf32>
    %274 = arith.addf %272, %273 : vector<2x2xf32>
    %275 = math.tanh %274 : vector<2x2xf32>
    %276 = arith.mulf %271, %275 : vector<2x2xf32>
    %c2 = arith.constant 2 : index
    %c0_64 = arith.constant 0 : index
    %c0_65 = arith.constant 0 : index
    %277 = vector.load %arg7[%c2, %c0_64, %c0_65] : memref<8x2x2xf32, #tpu.memory_space<vmem>>, vector<1x2x2xf32>
    %278 = vector.shape_cast %277 : vector<1x2x2xf32> to vector<2x2xf32>
    %279 = vector.shape_cast %276 : vector<2x2xf32> to vector<1x2x2xf32>
    tpu.vector_store %arg7[%c2, %c0_64, %c0_65], %279 {strides = array<i32>} : memref<8x2x2xf32, #tpu.memory_space<vmem>>, vector<1x2x2xf32>,
    %280 = vector.extract_strided_slice %276 {offsets = [0, 0], sizes = [2, 1], strides = [1, 1]} : vector<2x2xf32> to vector<2x1xf32>
    %281 = vector.broadcast %280 : vector<2x1xf32> to vector<2x8xf32>
    %282 = vector.broadcast %183 : vector<1x8xf32> to vector<2x8xf32>
    %283 = arith.mulf %281, %282 : vector<2x8xf32>
    %284 = arith.addf %181, %283 : vector<2x8xf32>
    %285 = vector.extract_strided_slice %276 {offsets = [0, 1], sizes = [2, 1], strides = [1, 1]} : vector<2x2xf32> to vector<2x1xf32>
    %286 = vector.broadcast %285 : vector<2x1xf32> to vector<2x8xf32>
    %287 = vector.broadcast %184 : vector<1x8xf32> to vector<2x8xf32>
    %288 = arith.mulf %286, %287 : vector<2x8xf32>
    %289 = arith.addf %284, %288 : vector<2x8xf32>
    %290 = arith.negf %289 : vector<2x8xf32>
    %291 = math.exp %290 : vector<2x8xf32>
    %cst_66 = arith.constant 1.000000e+00 : f32
    %292 = vector.broadcast %cst_66 : f32 to vector<2x8xf32>
    %293 = arith.addf %292, %291 : vector<2x8xf32>
    %294 = arith.divf %292, %293 : vector<2x8xf32>
    %295 = vector.extract_strided_slice %294 {offsets = [0, 0], sizes = [2, 2], strides = [1, 1]} : vector<2x8xf32> to vector<2x2xf32>
    %296 = vector.extract_strided_slice %294 {offsets = [0, 2], sizes = [2, 2], strides = [1, 1]} : vector<2x8xf32> to vector<2x2xf32>
    %297 = vector.extract_strided_slice %294 {offsets = [0, 4], sizes = [2, 2], strides = [1, 1]} : vector<2x8xf32> to vector<2x2xf32>
    %cst_67 = arith.constant 2.000000e+00 : f32
    %298 = vector.broadcast %cst_67 : f32 to vector<2x2xf32>
    %299 = arith.mulf %298, %297 : vector<2x2xf32>
    %cst_68 = arith.constant 1.000000e+00 : f32
    %300 = vector.broadcast %cst_68 : f32 to vector<2x2xf32>
    %301 = arith.subf %299, %300 : vector<2x2xf32>
    %302 = vector.extract_strided_slice %294 {offsets = [0, 6], sizes = [2, 2], strides = [1, 1]} : vector<2x8xf32> to vector<2x2xf32>
    %303 = arith.mulf %296, %274 : vector<2x2xf32>
    %304 = arith.mulf %295, %301 : vector<2x2xf32>
    %305 = arith.addf %303, %304 : vector<2x2xf32>
    %306 = math.tanh %305 : vector<2x2xf32>
    %307 = arith.mulf %302, %306 : vector<2x2xf32>
    %c3 = arith.constant 3 : index
    %c0_69 = arith.constant 0 : index
    %c0_70 = arith.constant 0 : index
    %308 = vector.load %arg7[%c3, %c0_69, %c0_70] : memref<8x2x2xf32, #tpu.memory_space<vmem>>, vector<1x2x2xf32>
    %309 = vector.shape_cast %308 : vector<1x2x2xf32> to vector<2x2xf32>
    %310 = vector.shape_cast %307 : vector<2x2xf32> to vector<1x2x2xf32>
    tpu.vector_store %arg7[%c3, %c0_69, %c0_70], %310 {strides = array<i32>} : memref<8x2x2xf32, #tpu.memory_space<vmem>>, vector<1x2x2xf32>,
    %311 = vector.extract_strided_slice %307 {offsets = [0, 0], sizes = [2, 1], strides = [1, 1]} : vector<2x2xf32> to vector<2x1xf32>
    %312 = vector.broadcast %311 : vector<2x1xf32> to vector<2x8xf32>
    %313 = vector.broadcast %183 : vector<1x8xf32> to vector<2x8xf32>
    %314 = arith.mulf %312, %313 : vector<2x8xf32>
    %315 = arith.addf %181, %314 : vector<2x8xf32>
    %316 = vector.extract_strided_slice %307 {offsets = [0, 1], sizes = [2, 1], strides = [1, 1]} : vector<2x2xf32> to vector<2x1xf32>
    %317 = vector.broadcast %316 : vector<2x1xf32> to vector<2x8xf32>
    %318 = vector.broadcast %184 : vector<1x8xf32> to vector<2x8xf32>
    %319 = arith.mulf %317, %318 : vector<2x8xf32>
    %320 = arith.addf %315, %319 : vector<2x8xf32>
    %321 = arith.negf %320 : vector<2x8xf32>
    %322 = math.exp %321 : vector<2x8xf32>
    %cst_71 = arith.constant 1.000000e+00 : f32
    %323 = vector.broadcast %cst_71 : f32 to vector<2x8xf32>
    %324 = arith.addf %323, %322 : vector<2x8xf32>
    %325 = arith.divf %323, %324 : vector<2x8xf32>
    %326 = vector.extract_strided_slice %325 {offsets = [0, 0], sizes = [2, 2], strides = [1, 1]} : vector<2x8xf32> to vector<2x2xf32>
    %327 = vector.extract_strided_slice %325 {offsets = [0, 2], sizes = [2, 2], strides = [1, 1]} : vector<2x8xf32> to vector<2x2xf32>
    %328 = vector.extract_strided_slice %325 {offsets = [0, 4], sizes = [2, 2], strides = [1, 1]} : vector<2x8xf32> to vector<2x2xf32>
    %cst_72 = arith.constant 2.000000e+00 : f32
    %329 = vector.broadcast %cst_72 : f32 to vector<2x2xf32>
    %330 = arith.mulf %329, %328 : vector<2x2xf32>
    %cst_73 = arith.constant 1.000000e+00 : f32
    %331 = vector.broadcast %cst_73 : f32 to vector<2x2xf32>
    %332 = arith.subf %330, %331 : vector<2x2xf32>
    %333 = vector.extract_strided_slice %325 {offsets = [0, 6], sizes = [2, 2], strides = [1, 1]} : vector<2x8xf32> to vector<2x2xf32>
    %334 = arith.mulf %327, %305 : vector<2x2xf32>
    %335 = arith.mulf %326, %332 : vector<2x2xf32>
    %336 = arith.addf %334, %335 : vector<2x2xf32>
    %337 = math.tanh %336 : vector<2x2xf32>
    %338 = arith.mulf %333, %337 : vector<2x2xf32>
    %c4 = arith.constant 4 : index
    %c0_74 = arith.constant 0 : index
    %c0_75 = arith.constant 0 : index
    %339 = vector.load %arg7[%c4, %c0_74, %c0_75] : memref<8x2x2xf32, #tpu.memory_space<vmem>>, vector<1x2x2xf32>
    %340 = vector.shape_cast %339 : vector<1x2x2xf32> to vector<2x2xf32>
    %341 = vector.shape_cast %338 : vector<2x2xf32> to vector<1x2x2xf32>
    tpu.vector_store %arg7[%c4, %c0_74, %c0_75], %341 {strides = array<i32>} : memref<8x2x2xf32, #tpu.memory_space<vmem>>, vector<1x2x2xf32>,
    %342 = vector.extract_strided_slice %338 {offsets = [0, 0], sizes = [2, 1], strides = [1, 1]} : vector<2x2xf32> to vector<2x1xf32>
    %343 = vector.broadcast %342 : vector<2x1xf32> to vector<2x8xf32>
    %344 = vector.broadcast %183 : vector<1x8xf32> to vector<2x8xf32>
    %345 = arith.mulf %343, %344 : vector<2x8xf32>
    %346 = arith.addf %181, %345 : vector<2x8xf32>
    %347 = vector.extract_strided_slice %338 {offsets = [0, 1], sizes = [2, 1], strides = [1, 1]} : vector<2x2xf32> to vector<2x1xf32>
    %348 = vector.broadcast %347 : vector<2x1xf32> to vector<2x8xf32>
    %349 = vector.broadcast %184 : vector<1x8xf32> to vector<2x8xf32>
    %350 = arith.mulf %348, %349 : vector<2x8xf32>
    %351 = arith.addf %346, %350 : vector<2x8xf32>
    %352 = arith.negf %351 : vector<2x8xf32>
    %353 = math.exp %352 : vector<2x8xf32>
    %cst_76 = arith.constant 1.000000e+00 : f32
    %354 = vector.broadcast %cst_76 : f32 to vector<2x8xf32>
    %355 = arith.addf %354, %353 : vector<2x8xf32>
    %356 = arith.divf %354, %355 : vector<2x8xf32>
    %357 = vector.extract_strided_slice %356 {offsets = [0, 0], sizes = [2, 2], strides = [1, 1]} : vector<2x8xf32> to vector<2x2xf32>
    %358 = vector.extract_strided_slice %356 {offsets = [0, 2], sizes = [2, 2], strides = [1, 1]} : vector<2x8xf32> to vector<2x2xf32>
    %359 = vector.extract_strided_slice %356 {offsets = [0, 4], sizes = [2, 2], strides = [1, 1]} : vector<2x8xf32> to vector<2x2xf32>
    %cst_77 = arith.constant 2.000000e+00 : f32
    %360 = vector.broadcast %cst_77 : f32 to vector<2x2xf32>
    %361 = arith.mulf %360, %359 : vector<2x2xf32>
    %cst_78 = arith.constant 1.000000e+00 : f32
    %362 = vector.broadcast %cst_78 : f32 to vector<2x2xf32>
    %363 = arith.subf %361, %362 : vector<2x2xf32>
    %364 = vector.extract_strided_slice %356 {offsets = [0, 6], sizes = [2, 2], strides = [1, 1]} : vector<2x8xf32> to vector<2x2xf32>
    %365 = arith.mulf %358, %336 : vector<2x2xf32>
    %366 = arith.mulf %357, %363 : vector<2x2xf32>
    %367 = arith.addf %365, %366 : vector<2x2xf32>
    %368 = math.tanh %367 : vector<2x2xf32>
    %369 = arith.mulf %364, %368 : vector<2x2xf32>
    %c5 = arith.constant 5 : index
    %c0_79 = arith.constant 0 : index
    %c0_80 = arith.constant 0 : index
    %370 = vector.load %arg7[%c5, %c0_79, %c0_80] : memref<8x2x2xf32, #tpu.memory_space<vmem>>, vector<1x2x2xf32>
    %371 = vector.shape_cast %370 : vector<1x2x2xf32> to vector<2x2xf32>
    %372 = vector.shape_cast %369 : vector<2x2xf32> to vector<1x2x2xf32>
    tpu.vector_store %arg7[%c5, %c0_79, %c0_80], %372 {strides = array<i32>} : memref<8x2x2xf32, #tpu.memory_space<vmem>>, vector<1x2x2xf32>,
    %373 = vector.extract_strided_slice %369 {offsets = [0, 0], sizes = [2, 1], strides = [1, 1]} : vector<2x2xf32> to vector<2x1xf32>
    %374 = vector.broadcast %373 : vector<2x1xf32> to vector<2x8xf32>
    %375 = vector.broadcast %183 : vector<1x8xf32> to vector<2x8xf32>
    %376 = arith.mulf %374, %375 : vector<2x8xf32>
    %377 = arith.addf %181, %376 : vector<2x8xf32>
    %378 = vector.extract_strided_slice %369 {offsets = [0, 1], sizes = [2, 1], strides = [1, 1]} : vector<2x2xf32> to vector<2x1xf32>
    %379 = vector.broadcast %378 : vector<2x1xf32> to vector<2x8xf32>
    %380 = vector.broadcast %184 : vector<1x8xf32> to vector<2x8xf32>
    %381 = arith.mulf %379, %380 : vector<2x8xf32>
    %382 = arith.addf %377, %381 : vector<2x8xf32>
    %383 = arith.negf %382 : vector<2x8xf32>
    %384 = math.exp %383 : vector<2x8xf32>
    %cst_81 = arith.constant 1.000000e+00 : f32
    %385 = vector.broadcast %cst_81 : f32 to vector<2x8xf32>
    %386 = arith.addf %385, %384 : vector<2x8xf32>
    %387 = arith.divf %385, %386 : vector<2x8xf32>
    %388 = vector.extract_strided_slice %387 {offsets = [0, 0], sizes = [2, 2], strides = [1, 1]} : vector<2x8xf32> to vector<2x2xf32>
    %389 = vector.extract_strided_slice %387 {offsets = [0, 2], sizes = [2, 2], strides = [1, 1]} : vector<2x8xf32> to vector<2x2xf32>
    %390 = vector.extract_strided_slice %387 {offsets = [0, 4], sizes = [2, 2], strides = [1, 1]} : vector<2x8xf32> to vector<2x2xf32>
    %cst_82 = arith.constant 2.000000e+00 : f32
    %391 = vector.broadcast %cst_82 : f32 to vector<2x2xf32>
    %392 = arith.mulf %391, %390 : vector<2x2xf32>
    %cst_83 = arith.constant 1.000000e+00 : f32
    %393 = vector.broadcast %cst_83 : f32 to vector<2x2xf32>
    %394 = arith.subf %392, %393 : vector<2x2xf32>
    %395 = vector.extract_strided_slice %387 {offsets = [0, 6], sizes = [2, 2], strides = [1, 1]} : vector<2x8xf32> to vector<2x2xf32>
    %396 = arith.mulf %389, %367 : vector<2x2xf32>
    %397 = arith.mulf %388, %394 : vector<2x2xf32>
    %398 = arith.addf %396, %397 : vector<2x2xf32>
    %399 = math.tanh %398 : vector<2x2xf32>
    %400 = arith.mulf %395, %399 : vector<2x2xf32>
    %c6 = arith.constant 6 : index
    %c0_84 = arith.constant 0 : index
    %c0_85 = arith.constant 0 : index
    %401 = vector.load %arg7[%c6, %c0_84, %c0_85] : memref<8x2x2xf32, #tpu.memory_space<vmem>>, vector<1x2x2xf32>
    %402 = vector.shape_cast %401 : vector<1x2x2xf32> to vector<2x2xf32>
    %403 = vector.shape_cast %400 : vector<2x2xf32> to vector<1x2x2xf32>
    tpu.vector_store %arg7[%c6, %c0_84, %c0_85], %403 {strides = array<i32>} : memref<8x2x2xf32, #tpu.memory_space<vmem>>, vector<1x2x2xf32>,
    %404 = vector.extract_strided_slice %400 {offsets = [0, 0], sizes = [2, 1], strides = [1, 1]} : vector<2x2xf32> to vector<2x1xf32>
    %405 = vector.broadcast %404 : vector<2x1xf32> to vector<2x8xf32>
    %406 = vector.broadcast %183 : vector<1x8xf32> to vector<2x8xf32>
    %407 = arith.mulf %405, %406 : vector<2x8xf32>
    %408 = arith.addf %181, %407 : vector<2x8xf32>
    %409 = vector.extract_strided_slice %400 {offsets = [0, 1], sizes = [2, 1], strides = [1, 1]} : vector<2x2xf32> to vector<2x1xf32>
    %410 = vector.broadcast %409 : vector<2x1xf32> to vector<2x8xf32>
    %411 = vector.broadcast %184 : vector<1x8xf32> to vector<2x8xf32>
    %412 = arith.mulf %410, %411 : vector<2x8xf32>
    %413 = arith.addf %408, %412 : vector<2x8xf32>
    %414 = arith.negf %413 : vector<2x8xf32>
    %415 = math.exp %414 : vector<2x8xf32>
    %cst_86 = arith.constant 1.000000e+00 : f32
    %416 = vector.broadcast %cst_86 : f32 to vector<2x8xf32>
    %417 = arith.addf %416, %415 : vector<2x8xf32>
    %418 = arith.divf %416, %417 : vector<2x8xf32>
    %419 = vector.extract_strided_slice %418 {offsets = [0, 0], sizes = [2, 2], strides = [1, 1]} : vector<2x8xf32> to vector<2x2xf32>
    %420 = vector.extract_strided_slice %418 {offsets = [0, 2], sizes = [2, 2], strides = [1, 1]} : vector<2x8xf32> to vector<2x2xf32>
    %421 = vector.extract_strided_slice %418 {offsets = [0, 4], sizes = [2, 2], strides = [1, 1]} : vector<2x8xf32> to vector<2x2xf32>
    %cst_87 = arith.constant 2.000000e+00 : f32
    %422 = vector.broadcast %cst_87 : f32 to vector<2x2xf32>
    %423 = arith.mulf %422, %421 : vector<2x2xf32>
    %cst_88 = arith.constant 1.000000e+00 : f32
    %424 = vector.broadcast %cst_88 : f32 to vector<2x2xf32>
    %425 = arith.subf %423, %424 : vector<2x2xf32>
    %426 = vector.extract_strided_slice %418 {offsets = [0, 6], sizes = [2, 2], strides = [1, 1]} : vector<2x8xf32> to vector<2x2xf32>
    %427 = arith.mulf %420, %398 : vector<2x2xf32>
    %428 = arith.mulf %419, %425 : vector<2x2xf32>
    %429 = arith.addf %427, %428 : vector<2x2xf32>
    %430 = math.tanh %429 : vector<2x2xf32>
    %431 = arith.mulf %426, %430 : vector<2x2xf32>
    %c7 = arith.constant 7 : index
    %c0_89 = arith.constant 0 : index
    %c0_90 = arith.constant 0 : index
    %432 = vector.load %arg7[%c7, %c0_89, %c0_90] : memref<8x2x2xf32, #tpu.memory_space<vmem>>, vector<1x2x2xf32>
    %433 = vector.shape_cast %432 : vector<1x2x2xf32> to vector<2x2xf32>
    %434 = vector.shape_cast %431 : vector<2x2xf32> to vector<1x2x2xf32>
    tpu.vector_store %arg7[%c7, %c0_89, %c0_90], %434 {strides = array<i32>} : memref<8x2x2xf32, #tpu.memory_space<vmem>>, vector<1x2x2xf32>,
    return
  }
}

</mosaic_0001>

<llo_original>
// kernel: tpu_custom_call.1
$region0: #{tpu_custom_call.1}
  #allocation0 [shape = 'u32[]', space=smem, size = 0x4, offset = 0x4, fixed_abs, tag = 'smem constant byte address 0x4 - core index']
  #allocation1 [shape = 'u32[72,128]{1,0:T(1,128)}', space=vmem, size = 0x9000, scoped, tag = 'internal scratch']
  %s0 = inlined_call_operand.vmem [shape: f32[16,2], index: 0, kind: input, shape index: {}]
  %s1 = inlined_call_operand.vmem [shape: f32[2,64], index: 1, kind: input, shape index: {}]
  %s2 = inlined_call_operand.vmem [shape: f32[16,64], index: 2, kind: input, shape index: {}]
  %s3 = inlined_call_operand.vmem [shape: f32[1,64], index: 3, kind: input, shape index: {}]
  %s4 = inlined_call_operand.vmem [shape: f32[16,8], index: 4, kind: input, shape index: {}]
  %s5 = inlined_call_operand.vmem [shape: f32[2,8], index: 5, kind: input, shape index: {}]
  %s6 = inlined_call_operand.vmem [shape: f32[1,8], index: 6, kind: input, shape index: {}]
  %s7 = inlined_call_operand.vmem [shape: f32[8,2,2], index: 7, kind: output, shape index: {}]
  %s8 = sld [smem:[#allocation0]]
  $region38: #{tpu_custom_call.1} parent=0
    _
  %s10 = ssub.s32 1, %s8
  %s11 = scalar_select 0, %s10, %s8
  // Predicated region
  $region2: #{tpu_custom_call.1} parent=0 // pred_check
    _
  $region3: #{tpu_custom_call.1} parent=0 // pred_check_branch
    %13 = sbr.rel (0) target = $region5
  $region4: #{tpu_custom_call.1} parent=0 // pred_region
    _
  $region5: #{tpu_custom_call.1} parent=0 // pred_fallthru
    _
  // Predicated region
  $region6: #{tpu_custom_call.1} parent=0 // pred_check
    _
  $region7: #{tpu_custom_call.1} parent=0 // pred_check_branch
    %15 = sbr.rel (0) target = $region9
  $region8: #{tpu_custom_call.1} parent=0 // pred_region
    _
  $region9: #{tpu_custom_call.1} parent=0 // pred_fallthru
    _
  // Predicated region
  $region10: #{tpu_custom_call.1} parent=0 // pred_check
    _
  $region11: #{tpu_custom_call.1} parent=0 // pred_check_branch
    %17 = sbr.rel (0) target = $region13
  $region12: #{tpu_custom_call.1} parent=0 // pred_region
    _
  $region13: #{tpu_custom_call.1} parent=0 // pred_fallthru
    _
  // Predicated region
  $region14: #{tpu_custom_call.1} parent=0 // pred_check
    _
  $region15: #{tpu_custom_call.1} parent=0 // pred_check_branch
    %19 = sbr.rel (0) target = $region17
  $region16: #{tpu_custom_call.1} parent=0 // pred_region
    _
  $region17: #{tpu_custom_call.1} parent=0 // pred_fallthru
    _
  // Predicated region
  $region18: #{tpu_custom_call.1} parent=0 // pred_check
    _
  $region19: #{tpu_custom_call.1} parent=0 // pred_check_branch
    %21 = sbr.rel (0) target = $region21
  $region20: #{tpu_custom_call.1} parent=0 // pred_region
    _
  $region21: #{tpu_custom_call.1} parent=0 // pred_fallthru
    _
  // Predicated region
  $region22: #{tpu_custom_call.1} parent=0 // pred_check
    _
  $region23: #{tpu_custom_call.1} parent=0 // pred_check_branch
    %23 = sbr.rel (0) target = $region25
  $region24: #{tpu_custom_call.1} parent=0 // pred_region
    _
  $region25: #{tpu_custom_call.1} parent=0 // pred_fallthru
    _
  // Predicated region
  $region26: #{tpu_custom_call.1} parent=0 // pred_check
    _
  $region27: #{tpu_custom_call.1} parent=0 // pred_check_branch
    %25 = sbr.rel (0) target = $region29
  $region28: #{tpu_custom_call.1} parent=0 // pred_region
    _
  $region29: #{tpu_custom_call.1} parent=0 // pred_fallthru
    _
  %v26 = vld [vmem:[%s2] sm:$0xff]
  %v27 = vld [vmem:[%s2 + $0x8] sm:$0xff]
  %v28 = vld [vmem:[%s0] sm:$0xff]
  %v29 = vld [vmem:[%s0 + $0x8] sm:$0xff]
  %v30 = vld [vmem:[%s1] sm:$0x3]
  %v31 = vld [vmem:[%s3] sm:$0x1]
  %v33 = vperm.slane %v31, 0
  %vm35 = vcmask 15360
  %v37 = vsel %vm35, %v28, 0
  %v40 = vsel %vm35, %v29, 0
  %vm42 = vcmask 1041408
  %v44 = vsel %vm42, %v30, 0
  %46 = vmatpush.msra.mxu0 0.0
  %47 = vmatpush.msra.mxu0 0.0
  %48 = vmatpush.msra.mxu0 0.0
  %49 = vmatpush.msra.mxu0 0.0
  %50 = vmatpush.msra.mxu0 0.0
  %51 = vmatpush.msra.mxu0 0.0
  %52 = vmatpush.msra.mxu0 0.0
  %53 = vmatpush.msra.mxu0 0.0
  %54 = vmatpush.msra.mxu0 0.0
  %55 = vmatpush.msra.mxu0 0.0
  %56 = vmatpush.msra.mxu0 0.0
  %57 = vmatpush.msra.mxu0 0.0
  %58 = vmatpush.msra.mxu0 0.0
  %59 = vmatpush.msra.mxu0 0.0
  %60 = vmatpush.msra.mxu0 0.0
  %61 = vmatpush.msra.mxu0 %v44
  %62 = vmatmul.f32.gmra.mxu0 %v37
  %v63 = vpop.f32.mrf.mxu0
  %v64 = vadd.f32 %v33, %v63
  %65 = vmatmul.f32.gmra.mxu0 %v40
  %v66 = vpop.f32.mrf.mxu0
  %v67 = vadd.f32 %v33, %v66
  %68 = vdwg.mxu0
  %vm69 = vcmask 130048
  %v71 = vsel %vm69, 0.0, 0
  %73 = vmatpush.msra.mxu0 0.0
  %74 = vmatpush.msra.mxu0 0.0
  %75 = vmatpush.msra.mxu0 0.0
  %76 = vmatpush.msra.mxu0 0.0
  %77 = vmatpush.msra.mxu0 0.0
  %78 = vmatpush.msra.mxu0 0.0
  %79 = vmatpush.msra.mxu0 0.0
  %80 = vmatpush.msra.mxu0 0.0
  %81 = vmatpush.msra.mxu0 0.0
  %82 = vmatpush.msra.mxu0 0.0
  %83 = vmatpush.msra.mxu0 0.0
  %84 = vmatpush.msra.mxu0 0.0
  %85 = vmatpush.msra.mxu0 0.0
  %86 = vmatpush.msra.mxu0 0.0
  %87 = vmatpush.msra.mxu0 %v27
  %88 = vmatpush.msra.mxu0 %v26
  %89 = vmatmul.f32.gmra.mxu0 %v71
  %v90 = vpop.f32.mrf.mxu0
  %v91 = vadd.f32 0.0, %v90
  %92 = vdwg.mxu0
  %v93 = vadd.f32 %v64, %v91
  %v94 = vxor.u32 %v93, 2147483648
  %v95 = vmul.f32 %v94, 1.442695
  %v96 = vpow.pop %v95
  %v97 = vadd.f32 %v96, 1.0
  %v98 = vrcp.pop %v97
  %v99 = vmul.f32 %v97, %v98
  %v100 = vsub.f32 1.0, %v99
  %v101 = vmul.f32 %v98, %v100
  %v102 = vadd.f32 %v98, %v101
  %vm103 = vweird.f32 %v97
  %vm104 = vweird.f32 %v98
  %vm105 = vmor %vm103, %vm104
  %v106 = vsel %vm105, %v98, %v102
  %v107 = vand.u32 2147483647, %v97
  %vm108 = vcmp.eq.f32.partialorder %v107, 8.507059e+37
  %v109 = vand.u32 %v97, 2147483648
  %v110 = vor.u32 1.1754944e-38, %v109
  %v111 = vsel %vm108, %v110, %v106
  %v112 = vmul.f32 1.0, %v111
  %v113 = vmul.f32 %v112, 2.0
  %v114 = vsub.f32 %v113, 1.0
  %v115 = vmul.f32 %v112, 0.0
  %117 = vrot.lane.b32.xlu0 %v114, 96
  %v118 = vpop.permute.xlu0 %117
  %v120 = vmul.f32 %v112, %v118
  %122 = vrot.lane.b32.xlu0 %v120, 16
  %v123 = vpop.permute.xlu0 %122
  %v125 = vadd.f32 %v115, %v123
  %v126 = vtanh.pop %v125
  %128 = vrot.lane.b32.xlu0 %v126, 32
  %v129 = vpop.permute.xlu0 %128
  %v131 = vmul.f32 %v112, %v129
  %133 = vrot.lane.b32.xlu0 %v131, 80
  %v134 = vpop.permute.xlu0 %133
  %v135 = vsel %vm69, %v134, 0
  %137 = vmatpush.msra.mxu0 0.0
  %138 = vmatpush.msra.mxu0 0.0
  %139 = vmatpush.msra.mxu0 0.0
  %140 = vmatpush.msra.mxu0 0.0
  %141 = vmatpush.msra.mxu0 0.0
  %142 = vmatpush.msra.mxu0 0.0
  %143 = vmatpush.msra.mxu0 0.0
  %144 = vmatpush.msra.mxu0 0.0
  %145 = vmatpush.msra.mxu0 0.0
  %146 = vmatpush.msra.mxu0 0.0
  %147 = vmatpush.msra.mxu0 0.0
  %148 = vmatpush.msra.mxu0 0.0
  %149 = vmatpush.msra.mxu0 0.0
  %150 = vmatpush.msra.mxu0 0.0
  %151 = vmatpush.msra.mxu0 %v27
  %152 = vmatpush.msra.mxu0 %v26
  %153 = vmatmul.f32.gmra.mxu0 %v135
  %v154 = vpop.f32.mrf.mxu0
  %v155 = vadd.f32 0.0, %v154
  %156 = vdwg.mxu0
  %v158 = vrot.slane %v155, 6
  %v160 = vadd.f32 %v64, %v158
  %v161 = vxor.u32 %v160, 2147483648
  %v162 = vmul.f32 %v161, 1.442695
  %v163 = vpow.pop %v162
  %v164 = vadd.f32 %v163, 1.0
  %v165 = vrcp.pop %v164
  %v166 = vmul.f32 %v164, %v165
  %v167 = vsub.f32 1.0, %v166
  %v168 = vmul.f32 %v165, %v167
  %v169 = vadd.f32 %v165, %v168
  %vm170 = vweird.f32 %v164
  %vm171 = vweird.f32 %v165
  %vm172 = vmor %vm170, %vm171
  %v173 = vsel %vm172, %v165, %v169
  %v174 = vand.u32 2147483647, %v164
  %vm175 = vcmp.eq.f32.partialorder %v174, 8.507059e+37
  %v176 = vand.u32 %v164, 2147483648
  %v177 = vor.u32 1.1754944e-38, %v176
  %v178 = vsel %vm175, %v177, %v173
  %v179 = vmul.f32 1.0, %v178
  %v180 = vmul.f32 %v179, 2.0
  %v181 = vsub.f32 %v180, 1.0
  %v183 = vrot.slane %v125, 6
  %v185 = vmul.f32 %v179, %v183
  %187 = vrot.lane.b32.xlu0 %v181, 96
  %v188 = vpop.permute.xlu0 %187
  %v190 = vmul.f32 %v179, %v188
  %192 = vrot.lane.b32.xlu0 %v190, 16
  %v193 = vpop.permute.xlu0 %192
  %v195 = vadd.f32 %v185, %v193
  %v196 = vtanh.pop %v195
  %198 = vrot.lane.b32.xlu0 %v196, 32
  %v199 = vpop.permute.xlu0 %198
  %v201 = vmul.f32 %v179, %v199
  %v203 = vrot.slane %v201, 2
  %204 = vrot.lane.b32.xlu0 %v203, 80
  %v205 = vpop.permute.xlu0 %204
  %v206 = vsel %vm69, %v205, 0
  %208 = vmatpush.msra.mxu0 0.0
  %209 = vmatpush.msra.mxu0 0.0
  %210 = vmatpush.msra.mxu0 0.0
  %211 = vmatpush.msra.mxu0 0.0
  %212 = vmatpush.msra.mxu0 0.0
  %213 = vmatpush.msra.mxu0 0.0
  %214 = vmatpush.msra.mxu0 0.0
  %215 = vmatpush.msra.mxu0 0.0
  %216 = vmatpush.msra.mxu0 0.0
  %217 = vmatpush.msra.mxu0 0.0
  %218 = vmatpush.msra.mxu0 0.0
  %219 = vmatpush.msra.mxu0 0.0
  %220 = vmatpush.msra.mxu0 0.0
  %221 = vmatpush.msra.mxu0 0.0
  %222 = vmatpush.msra.mxu0 %v27
  %223 = vmatpush.msra.mxu0 %v26
  %224 = vmatmul.f32.gmra.mxu0 %v206
  %v225 = vpop.f32.mrf.mxu0
  %v226 = vadd.f32 0.0, %v225
  %227 = vdwg.mxu0
  %v229 = vrot.slane %v226, 4
  %v231 = vadd.f32 %v64, %v229
  %v232 = vxor.u32 %v231, 2147483648
  %v233 = vmul.f32 %v232, 1.442695
  %v234 = vpow.pop %v233
  %v235 = vadd.f32 %v234, 1.0
  %v236 = vrcp.pop %v235
  %v237 = vmul.f32 %v235, %v236
  %v238 = vsub.f32 1.0, %v237
  %v239 = vmul.f32 %v236, %v238
  %v240 = vadd.f32 %v236, %v239
  %vm241 = vweird.f32 %v235
  %vm242 = vweird.f32 %v236
  %vm243 = vmor %vm241, %vm242
  %v244 = vsel %vm243, %v236, %v240
  %v245 = vand.u32 2147483647, %v235
  %vm246 = vcmp.eq.f32.partialorder %v245, 8.507059e+37
  %v247 = vand.u32 %v235, 2147483648
  %v248 = vor.u32 1.1754944e-38, %v247
  %v249 = vsel %vm246, %v248, %v244
  %v250 = vmul.f32 1.0, %v249
  %v251 = vmul.f32 %v250, 2.0
  %v252 = vsub.f32 %v251, 1.0
  %v254 = vrot.slane %v195, 6
  %v256 = vmul.f32 %v250, %v254
  %258 = vrot.lane.b32.xlu0 %v252, 96
  %v259 = vpop.permute.xlu0 %258
  %v261 = vmul.f32 %v250, %v259
  %263 = vrot.lane.b32.xlu0 %v261, 16
  %v264 = vpop.permute.xlu0 %263
  %v266 = vadd.f32 %v256, %v264
  %v267 = vtanh.pop %v266
  %269 = vrot.lane.b32.xlu0 %v267, 32
  %v270 = vpop.permute.xlu0 %269
  %v272 = vmul.f32 %v250, %v270
  %v274 = vrot.slane %v272, 4
  %275 = vrot.lane.b32.xlu0 %v274, 80
  %v276 = vpop.permute.xlu0 %275
  %v277 = vsel %vm69, %v276, 0
  %279 = vmatpush.msra.mxu0 0.0
  %280 = vmatpush.msra.mxu0 0.0
  %281 = vmatpush.msra.mxu0 0.0
  %282 = vmatpush.msra.mxu0 0.0
  %283 = vmatpush.msra.mxu0 0.0
  %284 = vmatpush.msra.mxu0 0.0
  %285 = vmatpush.msra.mxu0 0.0
  %286 = vmatpush.msra.mxu0 0.0
  %287 = vmatpush.msra.mxu0 0.0
  %288 = vmatpush.msra.mxu0 0.0
  %289 = vmatpush.msra.mxu0 0.0
  %290 = vmatpush.msra.mxu0 0.0
  %291 = vmatpush.msra.mxu0 0.0
  %292 = vmatpush.msra.mxu0 0.0
  %293 = vmatpush.msra.mxu0 %v27
  %294 = vmatpush.msra.mxu0 %v26
  %295 = vmatmul.f32.gmra.mxu0 %v277
  %v296 = vpop.f32.mrf.mxu0
  %v297 = vadd.f32 0.0, %v296
  %298 = vdwg.mxu0
  %v300 = vrot.slane %v297, 2
  %v302 = vadd.f32 %v64, %v300
  %v303 = vxor.u32 %v302, 2147483648
  %v304 = vmul.f32 %v303, 1.442695
  %v305 = vpow.pop %v304
  %v306 = vadd.f32 %v305, 1.0
  %v307 = vrcp.pop %v306
  %v308 = vmul.f32 %v306, %v307
  %v309 = vsub.f32 1.0, %v308
  %v310 = vmul.f32 %v307, %v309
  %v311 = vadd.f32 %v307, %v310
  %vm312 = vweird.f32 %v306
  %vm313 = vweird.f32 %v307
  %vm314 = vmor %vm312, %vm313
  %v315 = vsel %vm314, %v307, %v311
  %v316 = vand.u32 2147483647, %v306
  %vm317 = vcmp.eq.f32.partialorder %v316, 8.507059e+37
  %v318 = vand.u32 %v306, 2147483648
  %v319 = vor.u32 1.1754944e-38, %v318
  %v320 = vsel %vm317, %v319, %v315
  %v321 = vmul.f32 1.0, %v320
  %v322 = vmul.f32 %v321, 2.0
  %v323 = vsub.f32 %v322, 1.0
  %v325 = vrot.slane %v266, 6
  %v327 = vmul.f32 %v321, %v325
  %329 = vrot.lane.b32.xlu0 %v323, 96
  %v330 = vpop.permute.xlu0 %329
  %v332 = vmul.f32 %v321, %v330
  %334 = vrot.lane.b32.xlu0 %v332, 16
  %v335 = vpop.permute.xlu0 %334
  %v337 = vadd.f32 %v327, %v335
  %v338 = vtanh.pop %v337
  %340 = vrot.lane.b32.xlu0 %v338, 32
  %v341 = vpop.permute.xlu0 %340
  %v343 = vmul.f32 %v321, %v341
  %v345 = vrot.slane %v343, 6
  %346 = vrot.lane.b32.xlu0 %v345, 80
  %v347 = vpop.permute.xlu0 %346
  %v348 = vsel %vm69, %v347, 0
  %350 = vmatpush.msra.mxu0 0.0
  %351 = vmatpush.msra.mxu0 0.0
  %352 = vmatpush.msra.mxu0 0.0
  %353 = vmatpush.msra.mxu0 0.0
  %354 = vmatpush.msra.mxu0 0.0
  %355 = vmatpush.msra.mxu0 0.0
  %356 = vmatpush.msra.mxu0 0.0
  %357 = vmatpush.msra.mxu0 0.0
  %358 = vmatpush.msra.mxu0 0.0
  %359 = vmatpush.msra.mxu0 0.0
  %360 = vmatpush.msra.mxu0 0.0
  %361 = vmatpush.msra.mxu0 0.0
  %362 = vmatpush.msra.mxu0 0.0
  %363 = vmatpush.msra.mxu0 0.0
  %364 = vmatpush.msra.mxu0 %v27
  %365 = vmatpush.msra.mxu0 %v26
  %366 = vmatmul.f32.gmra.mxu0 %v348
  %v367 = vpop.f32.mrf.mxu0
  %v368 = vadd.f32 0.0, %v367
  %369 = vdwg.mxu0
  %v370 = vadd.f32 %v67, %v368
  %v371 = vxor.u32 %v370, 2147483648
  %v372 = vmul.f32 %v371, 1.442695
  %v373 = vpow.pop %v372
  %v374 = vadd.f32 %v373, 1.0
  %v375 = vrcp.pop %v374
  %v376 = vmul.f32 %v374, %v375
  %v377 = vsub.f32 1.0, %v376
  %v378 = vmul.f32 %v375, %v377
  %v379 = vadd.f32 %v375, %v378
  %vm380 = vweird.f32 %v374
  %vm381 = vweird.f32 %v375
  %vm382 = vmor %vm380, %vm381
  %v383 = vsel %vm382, %v375, %v379
  %v384 = vand.u32 2147483647, %v374
  %vm385 = vcmp.eq.f32.partialorder %v384, 8.507059e+37
  %v386 = vand.u32 %v374, 2147483648
  %v387 = vor.u32 1.1754944e-38, %v386
  %v388 = vsel %vm385, %v387, %v383
  %v389 = vmul.f32 1.0, %v388
  %v390 = vmul.f32 %v389, 2.0
  %v391 = vsub.f32 %v390, 1.0
  %v393 = vrot.slane %v337, 6
  %v395 = vmul.f32 %v389, %v393
  %397 = vrot.lane.b32.xlu0 %v391, 96
  %v398 = vpop.permute.xlu0 %397
  %v400 = vmul.f32 %v389, %v398
  %402 = vrot.lane.b32.xlu0 %v400, 16
  %v403 = vpop.permute.xlu0 %402
  %v405 = vadd.f32 %v395, %v403
  %v406 = vtanh.pop %v405
  %408 = vrot.lane.b32.xlu0 %v406, 32
  %v409 = vpop.permute.xlu0 %408
  %v411 = vmul.f32 %v389, %v409
  %413 = vrot.lane.b32.xlu0 %v411, 80
  %v414 = vpop.permute.xlu0 %413
  %v415 = vsel %vm69, %v414, 0
  %417 = vmatpush.msra.mxu0 0.0
  %418 = vmatpush.msra.mxu0 0.0
  %419 = vmatpush.msra.mxu0 0.0
  %420 = vmatpush.msra.mxu0 0.0
  %421 = vmatpush.msra.mxu0 0.0
  %422 = vmatpush.msra.mxu0 0.0
  %423 = vmatpush.msra.mxu0 0.0
  %424 = vmatpush.msra.mxu0 0.0
  %425 = vmatpush.msra.mxu0 0.0
  %426 = vmatpush.msra.mxu0 0.0
  %427 = vmatpush.msra.mxu0 0.0
  %428 = vmatpush.msra.mxu0 0.0
  %429 = vmatpush.msra.mxu0 0.0
  %430 = vmatpush.msra.mxu0 0.0
  %431 = vmatpush.msra.mxu0 %v27
  %432 = vmatpush.msra.mxu0 %v26
  %433 = vmatmul.f32.gmra.mxu0 %v415
  %v434 = vpop.f32.mrf.mxu0
  %v435 = vadd.f32 0.0, %v434
  %436 = vdwg.mxu0
  %v438 = vrot.slane %v435, 6
  %v440 = vadd.f32 %v67, %v438
  %v441 = vxor.u32 %v440, 2147483648
  %v442 = vmul.f32 %v441, 1.442695
  %v443 = vpow.pop %v442
  %v444 = vadd.f32 %v443, 1.0
  %v445 = vrcp.pop %v444
  %v446 = vmul.f32 %v444, %v445
  %v447 = vsub.f32 1.0, %v446
  %v448 = vmul.f32 %v445, %v447
  %v449 = vadd.f32 %v445, %v448
  %vm450 = vweird.f32 %v444
  %vm451 = vweird.f32 %v445
  %vm452 = vmor %vm450, %vm451
  %v453 = vsel %vm452, %v445, %v449
  %v454 = vand.u32 2147483647, %v444
  %vm455 = vcmp.eq.f32.partialorder %v454, 8.507059e+37
  %v456 = vand.u32 %v444, 2147483648
  %v457 = vor.u32 1.1754944e-38, %v456
  %v458 = vsel %vm455, %v457, %v453
  %v459 = vmul.f32 1.0, %v458
  %v460 = vmul.f32 %v459, 2.0
  %v461 = vsub.f32 %v460, 1.0
  %v463 = vrot.slane %v405, 6
  %v465 = vmul.f32 %v459, %v463
  %467 = vrot.lane.b32.xlu0 %v461, 96
  %v468 = vpop.permute.xlu0 %467
  %v470 = vmul.f32 %v459, %v468
  %472 = vrot.lane.b32.xlu0 %v470, 16
  %v473 = vpop.permute.xlu0 %472
  %v475 = vadd.f32 %v465, %v473
  %v476 = vtanh.pop %v475
  %478 = vrot.lane.b32.xlu0 %v476, 32
  %v479 = vpop.permute.xlu0 %478
  %v481 = vmul.f32 %v459, %v479
  %v483 = vrot.slane %v481, 2
  %484 = vrot.lane.b32.xlu0 %v483, 80
  %v485 = vpop.permute.xlu0 %484
  %v486 = vsel %vm69, %v485, 0
  %488 = vmatpush.msra.mxu0 0.0
  %489 = vmatpush.msra.mxu0 0.0
  %490 = vmatpush.msra.mxu0 0.0
  %491 = vmatpush.msra.mxu0 0.0
  %492 = vmatpush.msra.mxu0 0.0
  %493 = vmatpush.msra.mxu0 0.0
  %494 = vmatpush.msra.mxu0 0.0
  %495 = vmatpush.msra.mxu0 0.0
  %496 = vmatpush.msra.mxu0 0.0
  %497 = vmatpush.msra.mxu0 0.0
  %498 = vmatpush.msra.mxu0 0.0
  %499 = vmatpush.msra.mxu0 0.0
  %500 = vmatpush.msra.mxu0 0.0
  %501 = vmatpush.msra.mxu0 0.0
  %502 = vmatpush.msra.mxu0 %v27
  %503 = vmatpush.msra.mxu0 %v26
  %504 = vmatmul.f32.gmra.mxu0 %v486
  %v505 = vpop.f32.mrf.mxu0
  %v506 = vadd.f32 0.0, %v505
  %507 = vdwg.mxu0
  %v509 = vrot.slane %v506, 4
  %v511 = vadd.f32 %v67, %v509
  %v512 = vxor.u32 %v511, 2147483648
  %v513 = vmul.f32 %v512, 1.442695
  %v514 = vpow.pop %v513
  %v515 = vadd.f32 %v514, 1.0
  %v516 = vrcp.pop %v515
  %v517 = vmul.f32 %v515, %v516
  %v518 = vsub.f32 1.0, %v517
  %v519 = vmul.f32 %v516, %v518
  %v520 = vadd.f32 %v516, %v519
  %vm521 = vweird.f32 %v515
  %vm522 = vweird.f32 %v516
  %vm523 = vmor %vm521, %vm522
  %v524 = vsel %vm523, %v516, %v520
  %v525 = vand.u32 2147483647, %v515
  %vm526 = vcmp.eq.f32.partialorder %v525, 8.507059e+37
  %v527 = vand.u32 %v515, 2147483648
  %v528 = vor.u32 1.1754944e-38, %v527
  %v529 = vsel %vm526, %v528, %v524
  %v530 = vmul.f32 1.0, %v529
  %v531 = vmul.f32 %v530, 2.0
  %v532 = vsub.f32 %v531, 1.0
  %v534 = vrot.slane %v475, 6
  %v536 = vmul.f32 %v530, %v534
  %538 = vrot.lane.b32.xlu0 %v532, 96
  %v539 = vpop.permute.xlu0 %538
  %v541 = vmul.f32 %v530, %v539
  %543 = vrot.lane.b32.xlu0 %v541, 16
  %v544 = vpop.permute.xlu0 %543
  %v546 = vadd.f32 %v536, %v544
  %v547 = vtanh.pop %v546
  %549 = vrot.lane.b32.xlu0 %v547, 32
  %v550 = vpop.permute.xlu0 %549
  %v552 = vmul.f32 %v530, %v550
  %v554 = vrot.slane %v552, 4
  %555 = vrot.lane.b32.xlu0 %v554, 80
  %v556 = vpop.permute.xlu0 %555
  %v557 = vsel %vm69, %v556, 0
  %559 = vmatpush.msra.mxu0 0.0
  %560 = vmatpush.msra.mxu0 0.0
  %561 = vmatpush.msra.mxu0 0.0
  %562 = vmatpush.msra.mxu0 0.0
  %563 = vmatpush.msra.mxu0 0.0
  %564 = vmatpush.msra.mxu0 0.0
  %565 = vmatpush.msra.mxu0 0.0
  %566 = vmatpush.msra.mxu0 0.0
  %567 = vmatpush.msra.mxu0 0.0
  %568 = vmatpush.msra.mxu0 0.0
  %569 = vmatpush.msra.mxu0 0.0
  %570 = vmatpush.msra.mxu0 0.0
  %571 = vmatpush.msra.mxu0 0.0
  %572 = vmatpush.msra.mxu0 0.0
  %573 = vmatpush.msra.mxu0 %v27
  %574 = vmatpush.msra.mxu0 %v26
  %575 = vmatmul.f32.gmra.mxu0 %v557
  %v576 = vpop.f32.mrf.mxu0
  %v577 = vadd.f32 0.0, %v576
  %578 = vdwg.mxu0
  %v580 = vrot.slane %v577, 2
  %v582 = vadd.f32 %v67, %v580
  %v583 = vxor.u32 %v582, 2147483648
  %v584 = vmul.f32 %v583, 1.442695
  %v585 = vpow.pop %v584
  %v586 = vadd.f32 %v585, 1.0
  %v587 = vrcp.pop %v586
  %v588 = vmul.f32 %v586, %v587
  %v589 = vsub.f32 1.0, %v588
  %v590 = vmul.f32 %v587, %v589
  %v591 = vadd.f32 %v587, %v590
  %vm592 = vweird.f32 %v586
  %vm593 = vweird.f32 %v587
  %vm594 = vmor %vm592, %vm593
  %v595 = vsel %vm594, %v587, %v591
  %v596 = vand.u32 2147483647, %v586
  %vm597 = vcmp.eq.f32.partialorder %v596, 8.507059e+37
  %v598 = vand.u32 %v586, 2147483648
  %v599 = vor.u32 1.1754944e-38, %v598
  %v600 = vsel %vm597, %v599, %v595
  %v601 = vmul.f32 1.0, %v600
  %v602 = vmul.f32 %v601, 2.0
  %v603 = vsub.f32 %v602, 1.0
  %v605 = vrot.slane %v546, 6
  %v607 = vmul.f32 %v601, %v605
  %609 = vrot.lane.b32.xlu0 %v603, 96
  %v610 = vpop.permute.xlu0 %609
  %v612 = vmul.f32 %v601, %v610
  %614 = vrot.lane.b32.xlu0 %v612, 16
  %v615 = vpop.permute.xlu0 %614
  %v617 = vadd.f32 %v607, %v615
  %v618 = vtanh.pop %v617
  %620 = vrot.lane.b32.xlu0 %v618, 32
  %v621 = vpop.permute.xlu0 %620
  %v623 = vmul.f32 %v601, %v621
  %v624 = vld [vmem:[%s4] sm:$0xff]
  %v625 = vld [vmem:[%s4 + $0x8] sm:$0xff]
  %v626 = vld [vmem:[%s6] sm:$0x1]
  %v628 = vperm.slane %v626, 0
  %v631 = vrot.slane %v623, 6
  %632 = vrot.lane.b32.xlu0 %v631, 80
  %v633 = vpop.permute.xlu0 %632
  %v634 = vsel %vm69, %v633, 0
  %636 = vmatpush.msra.mxu0 0.0
  %637 = vmatpush.msra.mxu0 0.0
  %638 = vmatpush.msra.mxu0 0.0
  %639 = vmatpush.msra.mxu0 0.0
  %640 = vmatpush.msra.mxu0 0.0
  %641 = vmatpush.msra.mxu0 0.0
  %642 = vmatpush.msra.mxu0 0.0
  %643 = vmatpush.msra.mxu0 0.0
  %644 = vmatpush.msra.mxu0 0.0
  %645 = vmatpush.msra.mxu0 0.0
  %646 = vmatpush.msra.mxu0 0.0
  %647 = vmatpush.msra.mxu0 0.0
  %648 = vmatpush.msra.mxu0 0.0
  %649 = vmatpush.msra.mxu0 0.0
  %650 = vmatpush.msra.mxu0 %v625
  %651 = vmatpush.msra.mxu0 %v624
  %652 = vmatmul.f32.gmra.mxu0 %v634
  %v653 = vpop.f32.mrf.mxu0
  %v654 = vadd.f32 %v628, %v653
  %655 = vdwg.mxu0
  %v656 = vld [vmem:[%s5] sm:$0x3]
  %v657 = vperm.slane %v656, 0
  %v658 = vmul.f32 %v657, 0.0
  %v659 = vadd.f32 %v654, %v658
  %v660 = vperm.slane %v656, 1
  %v661 = vmul.f32 %v660, 0.0
  %v662 = vadd.f32 %v659, %v661
  %v663 = vxor.u32 %v662, 2147483648
  %v664 = vmul.f32 %v663, 1.442695
  %v665 = vpow.pop %v664
  %v666 = vadd.f32 %v665, 1.0
  %v667 = vrcp.pop %v666
  %v668 = vmul.f32 %v666, %v667
  %v669 = vsub.f32 1.0, %v668
  %v670 = vmul.f32 %v667, %v669
  %v671 = vadd.f32 %v667, %v670
  %vm672 = vweird.f32 %v666
  %vm673 = vweird.f32 %v667
  %vm674 = vmor %vm672, %vm673
  %v675 = vsel %vm674, %v667, %v671
  %v676 = vand.u32 2147483647, %v666
  %vm677 = vcmp.eq.f32.partialorder %v676, 8.507059e+37
  %v678 = vand.u32 %v666, 2147483648
  %v679 = vor.u32 1.1754944e-38, %v678
  %v680 = vsel %vm677, %v679, %v675
  %v681 = vmul.f32 1.0, %v680
  %v682 = vmul.f32 %v681, 2.0
  %v683 = vsub.f32 %v682, 1.0
  %v684 = vmul.f32 %v681, 0.0
  %686 = vrot.lane.b32.xlu0 %v683, 124
  %v687 = vpop.permute.xlu0 %686
  %v689 = vmul.f32 %v681, %v687
  %691 = vrot.lane.b32.xlu0 %v689, 2
  %v692 = vpop.permute.xlu0 %691
  %v694 = vadd.f32 %v684, %v692
  %v695 = vtanh.pop %v694
  %697 = vrot.lane.b32.xlu0 %v695, 4
  %v698 = vpop.permute.xlu0 %697
  %v700 = vmul.f32 %v681, %v698
  %702 = vrot.lane.b32.xlu0 %v700, 122
  %v703 = vpop.permute.xlu0 %702
  %vm705 = vcmask 9216
  %706 = vst.msk [vmem:[%s7] sm:$0x3] %vm705, %v703
  %707 = vset.pattern.permute.xlu0 6
  %708 = vperm.xlu0 %707, %v700
  %v709 = vpop.permute.xlu0 %708
  %v711 = vmul.f32 %v709, %v657
  %v712 = vadd.f32 %v654, %v711
  %713 = vset.pattern.permute.xlu0 7
  %714 = vperm.xlu0 %713, %v700
  %v715 = vpop.permute.xlu0 %714
  %v717 = vmul.f32 %v715, %v660
  %v718 = vadd.f32 %v712, %v717
  %v719 = vxor.u32 %v718, 2147483648
  %v720 = vmul.f32 %v719, 1.442695
  %v721 = vpow.pop %v720
  %v722 = vadd.f32 %v721, 1.0
  %v723 = vrcp.pop %v722
  %v724 = vmul.f32 %v722, %v723
  %v725 = vsub.f32 1.0, %v724
  %v726 = vmul.f32 %v723, %v725
  %v727 = vadd.f32 %v723, %v726
  %vm728 = vweird.f32 %v722
  %vm729 = vweird.f32 %v723
  %vm730 = vmor %vm728, %vm729
  %v731 = vsel %vm730, %v723, %v727
  %v732 = vand.u32 2147483647, %v722
  %vm733 = vcmp.eq.f32.partialorder %v732, 8.507059e+37
  %v734 = vand.u32 %v722, 2147483648
  %v735 = vor.u32 1.1754944e-38, %v734
  %v736 = vsel %vm733, %v735, %v731
  %v737 = vmul.f32 1.0, %v736
  %v738 = vmul.f32 %v737, 2.0
  %v739 = vsub.f32 %v738, 1.0
  %v740 = vmul.f32 %v737, %v694
  %742 = vrot.lane.b32.xlu0 %v739, 124
  %v743 = vpop.permute.xlu0 %742
  %v745 = vmul.f32 %v737, %v743
  %747 = vrot.lane.b32.xlu0 %v745, 2
  %v748 = vpop.permute.xlu0 %747
  %v750 = vadd.f32 %v740, %v748
  %v751 = vtanh.pop %v750
  %753 = vrot.lane.b32.xlu0 %v751, 4
  %v754 = vpop.permute.xlu0 %753
  %v756 = vmul.f32 %v737, %v754
  %758 = vrot.lane.b32.xlu0 %v756, 122
  %v759 = vpop.permute.xlu0 %758
  %s761 = scalar_lea.vmem %s7, 2
  %762 = vst.msk [vmem:[%s761] sm:$0x3] %vm705, %v759
  %763 = vset.pattern.permute.xlu0 6
  %764 = vperm.xlu0 %763, %v756
  %v765 = vpop.permute.xlu0 %764
  %v767 = vmul.f32 %v765, %v657
  %v768 = vadd.f32 %v654, %v767
  %769 = vset.pattern.permute.xlu0 7
  %770 = vperm.xlu0 %769, %v756
  %v771 = vpop.permute.xlu0 %770
  %v773 = vmul.f32 %v771, %v660
  %v774 = vadd.f32 %v768, %v773
  %v775 = vxor.u32 %v774, 2147483648
  %v776 = vmul.f32 %v775, 1.442695
  %v777 = vpow.pop %v776
  %v778 = vadd.f32 %v777, 1.0
  %v779 = vrcp.pop %v778
  %v780 = vmul.f32 %v778, %v779
  %v781 = vsub.f32 1.0, %v780
  %v782 = vmul.f32 %v779, %v781
  %v783 = vadd.f32 %v779, %v782
  %vm784 = vweird.f32 %v778
  %vm785 = vweird.f32 %v779
  %vm786 = vmor %vm784, %vm785
  %v787 = vsel %vm786, %v779, %v783
  %v788 = vand.u32 2147483647, %v778
  %vm789 = vcmp.eq.f32.partialorder %v788, 8.507059e+37
  %v790 = vand.u32 %v778, 2147483648
  %v791 = vor.u32 1.1754944e-38, %v790
  %v792 = vsel %vm789, %v791, %v787
  %v793 = vmul.f32 1.0, %v792
  %v794 = vmul.f32 %v793, 2.0
  %v795 = vsub.f32 %v794, 1.0
  %v796 = vmul.f32 %v793, %v750
  %798 = vrot.lane.b32.xlu0 %v795, 124
  %v799 = vpop.permute.xlu0 %798
  %v801 = vmul.f32 %v793, %v799
  %803 = vrot.lane.b32.xlu0 %v801, 2
  %v804 = vpop.permute.xlu0 %803
  %v806 = vadd.f32 %v796, %v804
  %v807 = vtanh.pop %v806
  %809 = vrot.lane.b32.xlu0 %v807, 4
  %v810 = vpop.permute.xlu0 %809
  %v812 = vmul.f32 %v793, %v810
  %814 = vrot.lane.b32.xlu0 %v812, 122
  %v815 = vpop.permute.xlu0 %814
  %s817 = scalar_lea.vmem %s7, 4
  %818 = vst.msk [vmem:[%s817] sm:$0x3] %vm705, %v815
  %819 = vset.pattern.permute.xlu0 6
  %820 = vperm.xlu0 %819, %v812
  %v821 = vpop.permute.xlu0 %820
  %v823 = vmul.f32 %v821, %v657
  %v824 = vadd.f32 %v654, %v823
  %825 = vset.pattern.permute.xlu0 7
  %826 = vperm.xlu0 %825, %v812
  %v827 = vpop.permute.xlu0 %826
  %v829 = vmul.f32 %v827, %v660
  %v830 = vadd.f32 %v824, %v829
  %v831 = vxor.u32 %v830, 2147483648
  %v832 = vmul.f32 %v831, 1.442695
  %v833 = vpow.pop %v832
  %v834 = vadd.f32 %v833, 1.0
  %v835 = vrcp.pop %v834
  %v836 = vmul.f32 %v834, %v835
  %v837 = vsub.f32 1.0, %v836
  %v838 = vmul.f32 %v835, %v837
  %v839 = vadd.f32 %v835, %v838
  %vm840 = vweird.f32 %v834
  %vm841 = vweird.f32 %v835
  %vm842 = vmor %vm840, %vm841
  %v843 = vsel %vm842, %v835, %v839
  %v844 = vand.u32 2147483647, %v834
  %vm845 = vcmp.eq.f32.partialorder %v844, 8.507059e+37
  %v846 = vand.u32 %v834, 2147483648
  %v847 = vor.u32 1.1754944e-38, %v846
  %v848 = vsel %vm845, %v847, %v843
  %v849 = vmul.f32 1.0, %v848
  %v850 = vmul.f32 %v849, 2.0
  %v851 = vsub.f32 %v850, 1.0
  %v852 = vmul.f32 %v849, %v806
  %854 = vrot.lane.b32.xlu0 %v851, 124
  %v855 = vpop.permute.xlu0 %854
  %v857 = vmul.f32 %v849, %v855
  %859 = vrot.lane.b32.xlu0 %v857, 2
  %v860 = vpop.permute.xlu0 %859
  %v862 = vadd.f32 %v852, %v860
  %v863 = vtanh.pop %v862
  %865 = vrot.lane.b32.xlu0 %v863, 4
  %v866 = vpop.permute.xlu0 %865
  %v868 = vmul.f32 %v849, %v866
  %870 = vrot.lane.b32.xlu0 %v868, 122
  %v871 = vpop.permute.xlu0 %870
  %s873 = scalar_lea.vmem %s7, 6
  %874 = vst.msk [vmem:[%s873] sm:$0x3] %vm705, %v871
  %875 = vset.pattern.permute.xlu0 6
  %876 = vperm.xlu0 %875, %v868
  %v877 = vpop.permute.xlu0 %876
  %v879 = vmul.f32 %v877, %v657
  %v880 = vadd.f32 %v654, %v879
  %881 = vset.pattern.permute.xlu0 7
  %882 = vperm.xlu0 %881, %v868
  %v883 = vpop.permute.xlu0 %882
  %v885 = vmul.f32 %v883, %v660
  %v886 = vadd.f32 %v880, %v885
  %v887 = vxor.u32 %v886, 2147483648
  %v888 = vmul.f32 %v887, 1.442695
  %v889 = vpow.pop %v888
  %v890 = vadd.f32 %v889, 1.0
  %v891 = vrcp.pop %v890
  %v892 = vmul.f32 %v890, %v891
  %v893 = vsub.f32 1.0, %v892
  %v894 = vmul.f32 %v891, %v893
  %v895 = vadd.f32 %v891, %v894
  %vm896 = vweird.f32 %v890
  %vm897 = vweird.f32 %v891
  %vm898 = vmor %vm896, %vm897
  %v899 = vsel %vm898, %v891, %v895
  %v900 = vand.u32 2147483647, %v890
  %vm901 = vcmp.eq.f32.partialorder %v900, 8.507059e+37
  %v902 = vand.u32 %v890, 2147483648
  %v903 = vor.u32 1.1754944e-38, %v902
  %v904 = vsel %vm901, %v903, %v899
  %v905 = vmul.f32 1.0, %v904
  %v906 = vmul.f32 %v905, 2.0
  %v907 = vsub.f32 %v906, 1.0
  %v908 = vmul.f32 %v905, %v862
  %910 = vrot.lane.b32.xlu0 %v907, 124
  %v911 = vpop.permute.xlu0 %910
  %v913 = vmul.f32 %v905, %v911
  %915 = vrot.lane.b32.xlu0 %v913, 2
  %v916 = vpop.permute.xlu0 %915
  %v918 = vadd.f32 %v908, %v916
  %v919 = vtanh.pop %v918
  %921 = vrot.lane.b32.xlu0 %v919, 4
  %v922 = vpop.permute.xlu0 %921
  %v924 = vmul.f32 %v905, %v922
  %926 = vrot.lane.b32.xlu0 %v924, 122
  %v927 = vpop.permute.xlu0 %926
  %s929 = scalar_lea.vmem %s7, 8
  %930 = vst.msk [vmem:[%s929] sm:$0x3] %vm705, %v927
  %931 = vset.pattern.permute.xlu0 6
  %932 = vperm.xlu0 %931, %v924
  %v933 = vpop.permute.xlu0 %932
  %v935 = vmul.f32 %v933, %v657
  %v936 = vadd.f32 %v654, %v935
  %937 = vset.pattern.permute.xlu0 7
  %938 = vperm.xlu0 %937, %v924
  %v939 = vpop.permute.xlu0 %938
  %v941 = vmul.f32 %v939, %v660
  %v942 = vadd.f32 %v936, %v941
  %v943 = vxor.u32 %v942, 2147483648
  %v944 = vmul.f32 %v943, 1.442695
  %v945 = vpow.pop %v944
  %v946 = vadd.f32 %v945, 1.0
  %v947 = vrcp.pop %v946
  %v948 = vmul.f32 %v946, %v947
  %v949 = vsub.f32 1.0, %v948
  %v950 = vmul.f32 %v947, %v949
  %v951 = vadd.f32 %v947, %v950
  %vm952 = vweird.f32 %v946
  %vm953 = vweird.f32 %v947
  %vm954 = vmor %vm952, %vm953
  %v955 = vsel %vm954, %v947, %v951
  %v956 = vand.u32 2147483647, %v946
  %vm957 = vcmp.eq.f32.partialorder %v956, 8.507059e+37
  %v958 = vand.u32 %v946, 2147483648
  %v959 = vor.u32 1.1754944e-38, %v958
  %v960 = vsel %vm957, %v959, %v955
  %v961 = vmul.f32 1.0, %v960
  %v962 = vmul.f32 %v961, 2.0
  %v963 = vsub.f32 %v962, 1.0
  %v964 = vmul.f32 %v961, %v918
  %966 = vrot.lane.b32.xlu0 %v963, 124
  %v967 = vpop.permute.xlu0 %966
  %v969 = vmul.f32 %v961, %v967
  %971 = vrot.lane.b32.xlu0 %v969, 2
  %v972 = vpop.permute.xlu0 %971
  %v974 = vadd.f32 %v964, %v972
  %v975 = vtanh.pop %v974
  %977 = vrot.lane.b32.xlu0 %v975, 4
  %v978 = vpop.permute.xlu0 %977
  %v980 = vmul.f32 %v961, %v978
  %982 = vrot.lane.b32.xlu0 %v980, 122
  %v983 = vpop.permute.xlu0 %982
  %s985 = scalar_lea.vmem %s7, 10
  %986 = vst.msk [vmem:[%s985] sm:$0x3] %vm705, %v983
  %987 = vset.pattern.permute.xlu0 6
  %988 = vperm.xlu0 %987, %v980
  %v989 = vpop.permute.xlu0 %988
  %v991 = vmul.f32 %v989, %v657
  %v992 = vadd.f32 %v654, %v991
  %993 = vset.pattern.permute.xlu0 7
  %994 = vperm.xlu0 %993, %v980
  %v995 = vpop.permute.xlu0 %994
  %v997 = vmul.f32 %v995, %v660
  %v998 = vadd.f32 %v992, %v997
  %v999 = vxor.u32 %v998, 2147483648
  %v1000 = vmul.f32 %v999, 1.442695
  %v1001 = vpow.pop %v1000
  %v1002 = vadd.f32 %v1001, 1.0
  %v1003 = vrcp.pop %v1002
  %v1004 = vmul.f32 %v1002, %v1003
  %v1005 = vsub.f32 1.0, %v1004
  %v1006 = vmul.f32 %v1003, %v1005
  %v1007 = vadd.f32 %v1003, %v1006
  %vm1008 = vweird.f32 %v1002
  %vm1009 = vweird.f32 %v1003
  %vm1010 = vmor %vm1008, %vm1009
  %v1011 = vsel %vm1010, %v1003, %v1007
  %v1012 = vand.u32 2147483647, %v1002
  %vm1013 = vcmp.eq.f32.partialorder %v1012, 8.507059e+37
  %v1014 = vand.u32 %v1002, 2147483648
  %v1015 = vor.u32 1.1754944e-38, %v1014
  %v1016 = vsel %vm1013, %v1015, %v1011
  %v1017 = vmul.f32 1.0, %v1016
  %v1018 = vmul.f32 %v1017, 2.0
  %v1019 = vsub.f32 %v1018, 1.0
  %v1020 = vmul.f32 %v1017, %v974
  %1022 = vrot.lane.b32.xlu0 %v1019, 124
  %v1023 = vpop.permute.xlu0 %1022
  %v1025 = vmul.f32 %v1017, %v1023
  %1027 = vrot.lane.b32.xlu0 %v1025, 2
  %v1028 = vpop.permute.xlu0 %1027
  %v1030 = vadd.f32 %v1020, %v1028
  %v1031 = vtanh.pop %v1030
  %1033 = vrot.lane.b32.xlu0 %v1031, 4
  %v1034 = vpop.permute.xlu0 %1033
  %v1036 = vmul.f32 %v1017, %v1034
  %1038 = vrot.lane.b32.xlu0 %v1036, 122
  %v1039 = vpop.permute.xlu0 %1038
  %s1041 = scalar_lea.vmem %s7, 12
  %1042 = vst.msk [vmem:[%s1041] sm:$0x3] %vm705, %v1039
  %1043 = vset.pattern.permute.xlu0 6
  %1044 = vperm.xlu0 %1043, %v1036
  %v1045 = vpop.permute.xlu0 %1044
  %v1047 = vmul.f32 %v1045, %v657
  %v1048 = vadd.f32 %v654, %v1047
  %1049 = vset.pattern.permute.xlu0 7
  %1050 = vperm.xlu0 %1049, %v1036
  %v1051 = vpop.permute.xlu0 %1050
  %v1053 = vmul.f32 %v1051, %v660
  %v1054 = vadd.f32 %v1048, %v1053
  %v1055 = vxor.u32 %v1054, 2147483648
  %v1056 = vmul.f32 %v1055, 1.442695
  %v1057 = vpow.pop %v1056
  %v1058 = vadd.f32 %v1057, 1.0
  %v1059 = vrcp.pop %v1058
  %v1060 = vmul.f32 %v1058, %v1059
  %v1061 = vsub.f32 1.0, %v1060
  %v1062 = vmul.f32 %v1059, %v1061
  %v1063 = vadd.f32 %v1059, %v1062
  %vm1064 = vweird.f32 %v1058
  %vm1065 = vweird.f32 %v1059
  %vm1066 = vmor %vm1064, %vm1065
  %v1067 = vsel %vm1066, %v1059, %v1063
  %v1068 = vand.u32 2147483647, %v1058
  %vm1069 = vcmp.eq.f32.partialorder %v1068, 8.507059e+37
  %v1070 = vand.u32 %v1058, 2147483648
  %v1071 = vor.u32 1.1754944e-38, %v1070
  %v1072 = vsel %vm1069, %v1071, %v1067
  %v1073 = vmul.f32 1.0, %v1072
  %v1074 = vmul.f32 %v1073, 2.0
  %v1075 = vsub.f32 %v1074, 1.0
  %v1076 = vmul.f32 %v1073, %v1030
  %1078 = vrot.lane.b32.xlu0 %v1075, 124
  %v1079 = vpop.permute.xlu0 %1078
  %v1081 = vmul.f32 %v1073, %v1079
  %1083 = vrot.lane.b32.xlu0 %v1081, 2
  %v1084 = vpop.permute.xlu0 %1083
  %v1086 = vadd.f32 %v1076, %v1084
  %v1087 = vtanh.pop %v1086
  %1089 = vrot.lane.b32.xlu0 %v1087, 4
  %v1090 = vpop.permute.xlu0 %1089
  %v1092 = vmul.f32 %v1073, %v1090
  %1094 = vrot.lane.b32.xlu0 %v1092, 122
  %v1095 = vpop.permute.xlu0 %1094
  %s1097 = scalar_lea.vmem %s7, 14
  %1098 = vst.msk [vmem:[%s1097] sm:$0x3] %vm705, %v1095
  // Predicated region
  $region30: #{tpu_custom_call.1} parent=0 // pred_check
    _
  $region31: #{tpu_custom_call.1} parent=0 // pred_check_branch
    %1100 = sbr.rel (0) target = $region33
  $region32: #{tpu_custom_call.1} parent=0 // pred_region
    _
  $region33: #{tpu_custom_call.1} parent=0 // pred_fallthru
    _
  // Predicated region
  $region34: #{tpu_custom_call.1} parent=0 // pred_check
    _
  $region35: #{tpu_custom_call.1} parent=0 // pred_check_branch
    %1102 = sbr.rel (0) target = $region37
  $region36: #{tpu_custom_call.1} parent=0 // pred_region
    _
  $region37: #{tpu_custom_call.1} parent=0 // pred_fallthru
    _

</llo_original>
